<compile_context>
chip_gen: v5e
topology: v5e:2x2
jax: 0.10.0
libtpu: 0.0.40
codegen_flags: <defaults>
</compile_context>

<pallas_src>
import jax
import jax.numpy as jnp
from jax import lax
from jax.experimental import pallas as pl
from jax.experimental.pallas import tpu as pltpu

_BN_EPS = 1e-5


def _round_up(x, m):
    return (x + m - 1) // m * m


def _make_kernels(Cp, H, W):
    """Build the three fused kernels for padded channel count Cp and (H, W)."""
    Hp, Wp = H + 2, W + 2
    L = Hp * Wp                          # flattened zero-padded image length
    L_pad = _round_up(L, 128)            # lane-dense pixel axis
    S = _round_up(Wp + 1, 128)           # 128-aligned halo cap >= max |tap shift|
    # tap t = kh*3 + kw  ->  flat offset of the (kh-1, kw-1) input neighbour
    taps = tuple((kh - 1) * Wp + (kw - 1) for kh in range(3) for kw in range(3))

    def _conv_fused(h_bf16, w_ref):
        # h_bf16: (Cp, L_pad) bf16 with zeros on the padding ring / lane tail.
        # w_ref : (Cp, 9*Cp) bf16 tap-major fused weights.
        # Returns (Cp, L_pad) f32; values at ring/tail positions are unused.
        cap = jnp.zeros((Cp, S), jnp.bfloat16)
        padded = jnp.concatenate([cap, h_bf16, cap], axis=1)          # (Cp, L2)
        stack = jnp.concatenate(
            [padded[:, S + d:S + d + L_pad] for d in taps], axis=0)   # (9Cp, L_pad)
        return jnp.dot(w_ref[...], stack, preferred_element_type=jnp.float32)

    def _bn_partials(y_f32, mask_f32, ps_ref):
        # masked per-channel sum / sum-of-squares over the real pixels.
        # (ps stays a (Cp, 2) block: narrow masked store, but negligible cost.)
        m = jnp.where(mask_f32 > 0.0, y_f32, 0.0)
        ps_ref[:, 0:1] = jnp.sum(m, axis=1, keepdims=True)
        ps_ref[:, 1:2] = jnp.sum(m * m, axis=1, keepdims=True)

    # ---- pass 1: conv1 + per-image BN1 partial sums -------------------------
    def conv1_kernel(x_ref, w_ref, mask_ref, y_ref, ps_ref):
        xb = x_ref[...].astype(jnp.bfloat16)          # ring/tail already zero
        acc = _conv_fused(xb, w_ref)                  # (Cp, L_pad) f32
        yb = acc.astype(jnp.bfloat16)
        y_ref[...] = yb                               # full-width aligned store
        # stats from the *rounded* values -> pass-2 affine is self-consistent
        _bn_partials(yb.astype(jnp.float32), mask_ref[...], ps_ref)

    # ---- pass 2: BN1 affine + ReLU + conv2 + per-image BN2 partial sums -----
    def conv2_kernel(y1_ref, w_ref, sc_ref, sh_ref, mask_ref, y2_ref, ps_ref):
        mask = mask_ref[...]                          # (1, L_pad) f32
        h = jnp.maximum(
            y1_ref[...].astype(jnp.float32) * sc_ref[...] + sh_ref[...], 0.0)
        h = jnp.where(mask > 0.0, h, 0.0)             # re-zero conv2 padding ring
        acc = _conv_fused(h.astype(jnp.bfloat16), w_ref)
        yb = acc.astype(jnp.bfloat16)
        y2_ref[...] = yb
        _bn_partials(yb.astype(jnp.float32), mask, ps_ref)

    # ---- pass 3: BN2 affine + residual add + ReLU (identity un-haloed) ------
    def bn_add_relu_kernel(y2_ref, x_ref, sc_ref, sh_ref, out_ref):
        out_ref[...] = jnp.maximum(
            y2_ref[...].astype(jnp.float32) * sc_ref[...] + sh_ref[...]
            + x_ref[...], 0.0)

    return conv1_kernel, conv2_kernel, bn_add_relu_kernel, (Hp, Wp, L, L_pad)


@jax.jit
def residual_block_forward(x_nchw, params):
    w1, b1, g1, be1, w2, b2, g2, be2 = params
    # b1/b2 intentionally unused: a per-channel conv bias added before
    # training-mode BatchNorm is cancelled exactly by the batch-mean subtraction.
    x = x_nchw.astype(jnp.float32)
    N, C, H, W = x.shape
    Cp = max(16, _round_up(C, 16))        # bf16 sublane tile; pad channels w/ 0
    k1, k2, k3, (Hp, Wp, L, L_pad) = _make_kernels(Cp, H, W)
    M = N * H * W                         # real pixels per channel per BN

    # --- plain-JAX glue: channel pad + spatial zero ring + flatten + lane pad
    xpad = jnp.pad(x, ((0, 0), (0, Cp - C), (1, 1), (1, 1)))       # (N,Cp,Hp,Wp)
    x_flat = jnp.pad(xpad.reshape(N, Cp, L),
                     ((0, 0), (0, 0), (0, L_pad - L)))             # (N,Cp,L_pad)

    # real-pixel mask over the lane-padded flat layout
    pos = jnp.arange(L_pad)
    row, col = pos // Wp, pos % Wp
    real = (pos < L) & (row >= 1) & (row <= H) & (col >= 1) & (col <= W)
    mask = real.astype(jnp.float32).reshape(1, L_pad)

    # fused conv weights: OIHW -> (C_out, 9*C_in) bf16, tap-major (t = kh*3+kw)
    def fuse_w(w):
        wp = jnp.pad(w, ((0, Cp - C), (0, Cp - C), (0, 0), (0, 0)))
        return (jnp.transpose(wp, (0, 2, 3, 1))
                .reshape(Cp, 9 * Cp).astype(jnp.bfloat16))
    w1f, w2f = fuse_w(w1), fuse_w(w2)

    def pad_c(v):
        return jnp.pad(v.astype(jnp.float32), (0, Cp - C))
    g1p, be1p, g2p, be2p = pad_c(g1), pad_c(be1), pad_c(g2), pad_c(be2)

    cparams = pltpu.CompilerParams(
        dimension_semantics=("parallel",),
        vmem_limit_bytes=48 * 1024 * 1024)

    def img(d_last):     # one image per grid step, (Cp, d_last) block
        return pl.BlockSpec((None, Cp, d_last), lambda n: (n, 0, 0))

    def shared(shape):   # small arrays shared by every grid step
        return pl.BlockSpec(shape, lambda n: (0,) * len(shape))

    # ---- pass 1: conv1 + BN1 partial sums ----
    y1, ps1 = pl.pallas_call(
        k1,
        grid=(N,),
        in_specs=[img(L_pad), shared((Cp, 9 * Cp)), shared((1, L_pad))],
        out_specs=[img(L_pad), img(2)],
        out_shape=[jax.ShapeDtypeStruct((N, Cp, L_pad), jnp.bfloat16),
                   jax.ShapeDtypeStruct((N, Cp, 2), jnp.float32)],
        compiler_params=cparams,
    )(x_flat, w1f, mask)

    def bn_affine(psum, gamma, beta):
        s = jnp.sum(psum[:, :, 0], axis=0)            # (Cp,)
        ss = jnp.sum(psum[:, :, 1], axis=0)           # (Cp,)
        mean = s / M
        # TODO(synk): E[x^2]-E[x]^2 is cancellation-prone for large per-channel
        # means; a shifted-sum / Welford reduction would be safer at depth.
        var = jnp.maximum(ss / M - mean * mean, 0.0)  # biased var (torch train)
        scale = gamma * lax.rsqrt(var + _BN_EPS)
        shift = beta - mean * scale
        return scale.reshape(Cp, 1), shift.reshape(Cp, 1)

    sc1, sh1 = bn_affine(ps1, g1p, be1p)

    # ---- pass 2: BN1 + ReLU + conv2 + BN2 partial sums ----
    y2, ps2 = pl.pallas_call(
        k2,
        grid=(N,),
        in_specs=[img(L_pad), shared((Cp, 9 * Cp)), shared((Cp, 1)),
                  shared((Cp, 1)), shared((1, L_pad))],
        out_specs=[img(L_pad), img(2)],
        out_shape=[jax.ShapeDtypeStruct((N, Cp, L_pad), jnp.bfloat16),
                   jax.ShapeDtypeStruct((N, Cp, 2), jnp.float32)],
        compiler_params=cparams,
    )(y1, w2f, sc1, sh1, mask)

    sc2, sh2 = bn_affine(ps2, g2p, be2p)

    # ---- pass 3: BN2 + residual add + ReLU ----
    outp = pl.pallas_call(
        k3,
        grid=(N,),
        in_specs=[img(L_pad), img(L_pad), shared((Cp, 1)), shared((Cp, 1))],
        out_specs=img(L_pad),
        out_shape=jax.ShapeDtypeStruct((N, Cp, L_pad), jnp.float32),
        compiler_params=cparams,
    )(y2, x_flat, sc2, sh2)

    # drop channel pad, lane pad and the conv zero ring -> NCHW
    out = outp[:, :C, :L].reshape(N, C, Hp, Wp)[:, :, 1:1 + H, 1:1 + W]
    return out


def residual_block_reference(x_nchw, params):
    """Pure-JAX reference (no Pallas).  Conv operands are cast to bf16 to match
    the kernel's bf16 MXU operands (accumulation stays f32); conv biases are
    included to demonstrate they cancel under training-mode BatchNorm."""
    w1, b1, g1, be1, w2, b2, g2, be2 = params
    x = x_nchw.astype(jnp.float32)

    def conv(z, w, b):
        y = lax.conv_general_dilated(
            z.astype(jnp.bfloat16), w.astype(jnp.bfloat16),
            window_strides=(1, 1), padding="SAME",
            dimension_numbers=("NCHW", "OIHW", "NCHW"),
            preferred_element_type=jnp.float32)
        return y + b.reshape(1, -1, 1, 1)

    def bn(y, g, be):
        mean = jnp.mean(y, axis=(0, 2, 3), keepdims=True)
        var = jnp.mean((y - mean) ** 2, axis=(0, 2, 3), keepdims=True)
        return ((y - mean) * lax.rsqrt(var + _BN_EPS) * g.reshape(1, -1, 1, 1)
                + be.reshape(1, -1, 1, 1))

    h = jnp.maximum(bn(conv(x, w1, b1), g1, be1), 0.0)
    out = bn(conv(h, w2, b2), g2, be2) + x
    return jnp.maximum(out, 0.0)


if __name__ == "__main__":
    N, C, H, W = 2, 4, 16, 16
    key = jax.random.PRNGKey(0)
    ks = jax.random.split(key, 9)

    x = jax.random.normal(ks[0], (N, C, H, W), jnp.float32)

    # Deterministic synthetic parameters (shapes mirror the module __init__).
    w_scale = 1.0 / jnp.sqrt(jnp.float32(C * 3 * 3))
    w1 = jax.random.normal(ks[1], (C, C, 3, 3), jnp.float32) * w_scale   # OIHW
    b1 = 0.1 * jax.random.normal(ks[2], (C,), jnp.float32)
    g1 = 1.0 + 0.1 * jax.random.normal(ks[3], (C,), jnp.float32)
    be1 = 0.1 * jax.random.normal(ks[4], (C,), jnp.float32)
    w2 = jax.random.normal(ks[5], (C, C, 3, 3), jnp.float32) * w_scale
    b2 = 0.1 * jax.random.normal(ks[6], (C,), jnp.float32)
    g2 = 1.0 + 0.1 * jax.random.normal(ks[7], (C,), jnp.float32)
    be2 = 0.1 * jax.random.normal(ks[8], (C,), jnp.float32)
    params = (w1, b1, g1, be1, w2, b2, g2, be2)

    out = jax.block_until_ready(residual_block_forward(x, params))
    ref = jax.block_until_ready(residual_block_reference(x, params))

    assert out.shape == (N, C, H, W), out.shape
    max_err = float(jnp.max(jnp.abs(out - ref)))
    # Tolerance sized for bf16 MXU operands PLUS bf16 storage of the y1/y2
    # intermediates (~2^-8 relative on O(1) post-BN activations, propagated
    # through conv2 and two BatchNorms); all reductions / BN / residual math
    # stay f32 in both paths.
    assert max_err < 4e-2, f"mismatch vs reference: max abs err = {max_err}"

    print("KERNEL_OK")
</pallas_src>

<mosaic_0001>
module attributes {stable_mosaic.version = 11 : i64} {
  func.func @bn_add_relu_kernel(%arg0: i32, %arg1: memref<1x16x384xbf16, #tpu.memory_space<vmem>>, %arg2: memref<1x16x384xf32, #tpu.memory_space<vmem>>, %arg3: memref<16x1xf32, #tpu.memory_space<vmem>>, %arg4: memref<16x1xf32, #tpu.memory_space<vmem>>, %arg5: memref<1x16x384xf32, #tpu.memory_space<vmem>>) attributes {dimension_semantics = [#tpu.dimension_semantics<parallel>], iteration_bounds = array<i64: 2>, scalar_prefetch = 0 : i64, scratch_operands = 0 : i64, tpu.core_type = #tpu.core_type<tc>, window_params = [{transform_indices = @transform_0, window_bounds = array<i64: 1, 16, 384>}, {transform_indices = @transform_1, window_bounds = array<i64: 1, 16, 384>}, {pipeline_mode = #tpu.pipeline_mode<synchronous>, transform_indices = @transform_2, window_bounds = array<i64: 16, 1>}, {pipeline_mode = #tpu.pipeline_mode<synchronous>, transform_indices = @transform_3, window_bounds = array<i64: 16, 1>}, {transform_indices = @transform_4, window_bounds = array<i64: 1, 16, 384>}]} {
    %c0 = arith.constant 0 : index
    %c0_0 = arith.constant 0 : index
    %c0_1 = arith.constant 0 : index
    %0 = vector.load %arg1[%c0, %c0_0, %c0_1] : memref<1x16x384xbf16, #tpu.memory_space<vmem>>, vector<1x16x384xbf16>
    %1 = vector.shape_cast %0 : vector<1x16x384xbf16> to vector<16x384xbf16>
    %2 = arith.extf %1 : vector<16x384xbf16> to vector<16x384xf32>
    %c0_2 = arith.constant 0 : index
    %c0_3 = arith.constant 0 : index
    %3 = vector.load %arg3[%c0_2, %c0_3] : memref<16x1xf32, #tpu.memory_space<vmem>>, vector<16x1xf32>
    %4 = vector.broadcast %3 : vector<16x1xf32> to vector<16x384xf32>
    %5 = arith.mulf %2, %4 : vector<16x384xf32>
    %c0_4 = arith.constant 0 : index
    %c0_5 = arith.constant 0 : index
    %6 = vector.load %arg4[%c0_4, %c0_5] : memref<16x1xf32, #tpu.memory_space<vmem>>, vector<16x1xf32>
    %7 = vector.broadcast %6 : vector<16x1xf32> to vector<16x384xf32>
    %8 = arith.addf %5, %7 : vector<16x384xf32>
    %c0_6 = arith.constant 0 : index
    %c0_7 = arith.constant 0 : index
    %c0_8 = arith.constant 0 : index
    %9 = vector.load %arg2[%c0_6, %c0_7, %c0_8] : memref<1x16x384xf32, #tpu.memory_space<vmem>>, vector<1x16x384xf32>
    %10 = vector.shape_cast %9 : vector<1x16x384xf32> to vector<16x384xf32>
    %11 = arith.addf %8, %10 : vector<16x384xf32>
    %cst = arith.constant 0.000000e+00 : f32
    %12 = vector.broadcast %cst : f32 to vector<16x384xf32>
    %13 = arith.maximumf %11, %12 : vector<16x384xf32>
    %c0_9 = arith.constant 0 : index
    %c0_10 = arith.constant 0 : index
    %c0_11 = arith.constant 0 : index
    %14 = vector.load %arg5[%c0_9, %c0_10, %c0_11] : memref<1x16x384xf32, #tpu.memory_space<vmem>>, vector<1x16x384xf32>
    %15 = vector.shape_cast %14 : vector<1x16x384xf32> to vector<16x384xf32>
    %16 = vector.shape_cast %13 : vector<16x384xf32> to vector<1x16x384xf32>
    tpu.vector_store %arg5[%c0_9, %c0_10, %c0_11], %16 {strides = array<i32>} : memref<1x16x384xf32, #tpu.memory_space<vmem>>, vector<1x16x384xf32>,
    return
  }
  func.func @transform_0(%arg0: i32) -> (i32, i32, i32) {
    %c0_i32 = arith.constant 0 : i32
    %c0_i32_0 = arith.constant 0 : i32
    %c0_i32_1 = arith.constant 0 : i32
    return %arg0, %c0_i32, %c0_i32_0 : i32, i32, i32
  }
  func.func @transform_1(%arg0: i32) -> (i32, i32, i32) {
    %c0_i32 = arith.constant 0 : i32
    %c0_i32_0 = arith.constant 0 : i32
    %c0_i32_1 = arith.constant 0 : i32
    return %arg0, %c0_i32, %c0_i32_0 : i32, i32, i32
  }
  func.func @transform_2(%arg0: i32) -> (i32, i32) {
    %c0_i32 = arith.constant 0 : i32
    %c0_i32_0 = arith.constant 0 : i32
    %c0_i32_1 = arith.constant 0 : i32
    return %c0_i32, %c0_i32_0 : i32, i32
  }
  func.func @transform_3(%arg0: i32) -> (i32, i32) {
    %c0_i32 = arith.constant 0 : i32
    %c0_i32_0 = arith.constant 0 : i32
    %c0_i32_1 = arith.constant 0 : i32
    return %c0_i32, %c0_i32_0 : i32, i32
  }
  func.func @transform_4(%arg0: i32) -> (i32, i32, i32) {
    %c0_i32 = arith.constant 0 : i32
    %c0_i32_0 = arith.constant 0 : i32
    %c0_i32_1 = arith.constant 0 : i32
    return %arg0, %c0_i32, %c0_i32_0 : i32, i32, i32
  }
}

module attributes {stable_mosaic.version = 11 : i64} {
  func.func @conv1_kernel(%arg0: i32, %arg1: memref<1x16x384xf32, #tpu.memory_space<vmem>>, %arg2: memref<16x144xbf16, #tpu.memory_space<vmem>>, %arg3: memref<1x384xf32, #tpu.memory_space<vmem>>, %arg4: memref<1x16x384xbf16, #tpu.memory_space<vmem>>, %arg5: memref<1x16x2xf32, #tpu.memory_space<vmem>>) attributes {dimension_semantics = [#tpu.dimension_semantics<parallel>], iteration_bounds = array<i64: 2>, scalar_prefetch = 0 : i64, scratch_operands = 0 : i64, tpu.core_type = #tpu.core_type<tc>, window_params = [{transform_indices = @transform_0, window_bounds = array<i64: 1, 16, 384>}, {pipeline_mode = #tpu.pipeline_mode<synchronous>, transform_indices = @transform_1, window_bounds = array<i64: 16, 144>}, {pipeline_mode = #tpu.pipeline_mode<synchronous>, transform_indices = @transform_2, window_bounds = array<i64: 1, 384>}, {transform_indices = @transform_3, window_bounds = array<i64: 1, 16, 384>}, {transform_indices = @transform_4, window_bounds = array<i64: 1, 16, 2>}]} {
    %c0 = arith.constant 0 : index
    %c0_0 = arith.constant 0 : index
    %c0_1 = arith.constant 0 : index
    %0 = vector.load %arg1[%c0, %c0_0, %c0_1] : memref<1x16x384xf32, #tpu.memory_space<vmem>>, vector<1x16x384xf32>
    %1 = vector.shape_cast %0 : vector<1x16x384xf32> to vector<16x384xf32>
    %2 = arith.truncf %1 : vector<16x384xf32> to vector<16x384xbf16>
    %cst = arith.constant 0.000000e+00 : bf16
    %3 = vector.broadcast %cst : bf16 to vector<16x128xbf16>
    %4 = tpu.concatenate %3, %2, %3 in 1 : vector<16x128xbf16>, vector<16x384xbf16>, vector<16x128xbf16> -> vector<16x640xbf16>
    %5 = vector.extract_strided_slice %4 {offsets = [0, 109], sizes = [16, 384], strides = [1, 1]} : vector<16x640xbf16> to vector<16x384xbf16>
    %6 = vector.extract_strided_slice %4 {offsets = [0, 110], sizes = [16, 384], strides = [1, 1]} : vector<16x640xbf16> to vector<16x384xbf16>
    %7 = vector.extract_strided_slice %4 {offsets = [0, 111], sizes = [16, 384], strides = [1, 1]} : vector<16x640xbf16> to vector<16x384xbf16>
    %8 = vector.extract_strided_slice %4 {offsets = [0, 127], sizes = [16, 384], strides = [1, 1]} : vector<16x640xbf16> to vector<16x384xbf16>
    %9 = vector.extract_strided_slice %4 {offsets = [0, 128], sizes = [16, 384], strides = [1, 1]} : vector<16x640xbf16> to vector<16x384xbf16>
    %10 = vector.extract_strided_slice %4 {offsets = [0, 129], sizes = [16, 384], strides = [1, 1]} : vector<16x640xbf16> to vector<16x384xbf16>
    %11 = vector.extract_strided_slice %4 {offsets = [0, 145], sizes = [16, 384], strides = [1, 1]} : vector<16x640xbf16> to vector<16x384xbf16>
    %12 = vector.extract_strided_slice %4 {offsets = [0, 146], sizes = [16, 384], strides = [1, 1]} : vector<16x640xbf16> to vector<16x384xbf16>
    %13 = vector.extract_strided_slice %4 {offsets = [0, 147], sizes = [16, 384], strides = [1, 1]} : vector<16x640xbf16> to vector<16x384xbf16>
    %14 = tpu.concatenate %5, %6, %7, %8, %9, %10, %11, %12, %13 in 0 : vector<16x384xbf16>, vector<16x384xbf16>, vector<16x384xbf16>, vector<16x384xbf16>, vector<16x384xbf16>, vector<16x384xbf16>, vector<16x384xbf16>, vector<16x384xbf16>, vector<16x384xbf16> -> vector<144x384xbf16>
    %c0_2 = arith.constant 0 : index
    %c0_3 = arith.constant 0 : index
    %15 = vector.load %arg2[%c0_2, %c0_3] : memref<16x144xbf16, #tpu.memory_space<vmem>>, vector<16x144xbf16>
    %cst_4 = arith.constant dense<0.000000e+00> : vector<16x384xf32>
    %16 = tpu.matmul %15, %14, %cst_4 {dimension_numbers = #tpu.dot_dimension_numbers<[1], [0], [0], [1], [0, 0, 1, 1], [], []>} : vector<16x144xbf16>, vector<144x384xbf16>, vector<16x384xf32> -> vector<16x384xf32>
    %17 = arith.truncf %16 : vector<16x384xf32> to vector<16x384xbf16>
    %c0_5 = arith.constant 0 : index
    %c0_6 = arith.constant 0 : index
    %c0_7 = arith.constant 0 : index
    %18 = vector.load %arg4[%c0_5, %c0_6, %c0_7] : memref<1x16x384xbf16, #tpu.memory_space<vmem>>, vector<1x16x384xbf16>
    %19 = vector.shape_cast %18 : vector<1x16x384xbf16> to vector<16x384xbf16>
    %20 = vector.shape_cast %17 : vector<16x384xbf16> to vector<1x16x384xbf16>
    tpu.vector_store %arg4[%c0_5, %c0_6, %c0_7], %20 {strides = array<i32>} : memref<1x16x384xbf16, #tpu.memory_space<vmem>>, vector<1x16x384xbf16>,
    %21 = arith.extf %17 : vector<16x384xbf16> to vector<16x384xf32>
    %c0_8 = arith.constant 0 : index
    %c0_9 = arith.constant 0 : index
    %22 = vector.load %arg3[%c0_8, %c0_9] : memref<1x384xf32, #tpu.memory_space<vmem>>, vector<1x384xf32>
    %cst_10 = arith.constant 0.000000e+00 : f32
    %23 = vector.broadcast %cst_10 : f32 to vector<1x384xf32>
    %24 = arith.cmpf ogt, %22, %23 : vector<1x384xf32>
    %cst_11 = arith.constant 0.000000e+00 : f32
    %25 = vector.shape_cast %24 : vector<1x384xi1> to vector<1x384xi1>
    %26 = vector.broadcast %25 : vector<1x384xi1> to vector<16x384xi1>
    %27 = vector.broadcast %cst_11 : f32 to vector<16x384xf32>
    %28 = arith.select %26, %21, %27 : vector<16x384xi1>, vector<16x384xf32>
    %cst_12 = arith.constant dense<0.000000e+00> : vector<16xf32>
    %29 = vector.multi_reduction <add>, %28, %cst_12 [1] : vector<16x384xf32> to vector<16xf32>
    %30 = vector.shape_cast %29 : vector<16xf32> to vector<16x1xf32>
    %c0_13 = arith.constant 0 : index
    %c0_14 = arith.constant 0 : index
    %c0_15 = arith.constant 0 : index
    %31 = vector.load %arg5[%c0_13, %c0_14, %c0_15] : memref<1x16x2xf32, #tpu.memory_space<vmem>>, vector<1x16x1xf32>
    %32 = vector.shape_cast %31 : vector<1x16x1xf32> to vector<16x1xf32>
    %33 = vector.shape_cast %30 : vector<16x1xf32> to vector<1x16x1xf32>
    tpu.vector_store %arg5[%c0_13, %c0_14, %c0_15], %33 {strides = array<i32>} : memref<1x16x2xf32, #tpu.memory_space<vmem>>, vector<1x16x1xf32>,
    %34 = arith.mulf %28, %28 : vector<16x384xf32>
    %cst_16 = arith.constant dense<0.000000e+00> : vector<16xf32>
    %35 = vector.multi_reduction <add>, %34, %cst_16 [1] : vector<16x384xf32> to vector<16xf32>
    %36 = vector.shape_cast %35 : vector<16xf32> to vector<16x1xf32>
    %c0_17 = arith.constant 0 : index
    %c0_18 = arith.constant 0 : index
    %c1 = arith.constant 1 : index
    %37 = vector.load %arg5[%c0_17, %c0_18, %c1] : memref<1x16x2xf32, #tpu.memory_space<vmem>>, vector<1x16x1xf32>
    %38 = vector.shape_cast %37 : vector<1x16x1xf32> to vector<16x1xf32>
    %39 = vector.shape_cast %36 : vector<16x1xf32> to vector<1x16x1xf32>
    tpu.vector_store %arg5[%c0_17, %c0_18, %c1], %39 {strides = array<i32>} : memref<1x16x2xf32, #tpu.memory_space<vmem>>, vector<1x16x1xf32>,
    return
  }
  func.func @transform_0(%arg0: i32) -> (i32, i32, i32) {
    %c0_i32 = arith.constant 0 : i32
    %c0_i32_0 = arith.constant 0 : i32
    %c0_i32_1 = arith.constant 0 : i32
    return %arg0, %c0_i32, %c0_i32_0 : i32, i32, i32
  }
  func.func @transform_1(%arg0: i32) -> (i32, i32) {
    %c0_i32 = arith.constant 0 : i32
    %c0_i32_0 = arith.constant 0 : i32
    %c0_i32_1 = arith.constant 0 : i32
    return %c0_i32, %c0_i32_0 : i32, i32
  }
  func.func @transform_2(%arg0: i32) -> (i32, i32) {
    %c0_i32 = arith.constant 0 : i32
    %c0_i32_0 = arith.constant 0 : i32
    %c0_i32_1 = arith.constant 0 : i32
    return %c0_i32, %c0_i32_0 : i32, i32
  }
  func.func @transform_3(%arg0: i32) -> (i32, i32, i32) {
    %c0_i32 = arith.constant 0 : i32
    %c0_i32_0 = arith.constant 0 : i32
    %c0_i32_1 = arith.constant 0 : i32
    return %arg0, %c0_i32, %c0_i32_0 : i32, i32, i32
  }
  func.func @transform_4(%arg0: i32) -> (i32, i32, i32) {
    %c0_i32 = arith.constant 0 : i32
    %c0_i32_0 = arith.constant 0 : i32
    %c0_i32_1 = arith.constant 0 : i32
    return %arg0, %c0_i32, %c0_i32_0 : i32, i32, i32
  }
}

module attributes {stable_mosaic.version = 11 : i64} {
  func.func @conv2_kernel(%arg0: i32, %arg1: memref<1x16x384xbf16, #tpu.memory_space<vmem>>, %arg2: memref<16x144xbf16, #tpu.memory_space<vmem>>, %arg3: memref<16x1xf32, #tpu.memory_space<vmem>>, %arg4: memref<16x1xf32, #tpu.memory_space<vmem>>, %arg5: memref<1x384xf32, #tpu.memory_space<vmem>>, %arg6: memref<1x16x384xbf16, #tpu.memory_space<vmem>>, %arg7: memref<1x16x2xf32, #tpu.memory_space<vmem>>) attributes {dimension_semantics = [#tpu.dimension_semantics<parallel>], iteration_bounds = array<i64: 2>, scalar_prefetch = 0 : i64, scratch_operands = 0 : i64, tpu.core_type = #tpu.core_type<tc>, window_params = [{transform_indices = @transform_0, window_bounds = array<i64: 1, 16, 384>}, {pipeline_mode = #tpu.pipeline_mode<synchronous>, transform_indices = @transform_1, window_bounds = array<i64: 16, 144>}, {pipeline_mode = #tpu.pipeline_mode<synchronous>, transform_indices = @transform_2, window_bounds = array<i64: 16, 1>}, {pipeline_mode = #tpu.pipeline_mode<synchronous>, transform_indices = @transform_3, window_bounds = array<i64: 16, 1>}, {pipeline_mode = #tpu.pipeline_mode<synchronous>, transform_indices = @transform_4, window_bounds = array<i64: 1, 384>}, {transform_indices = @transform_5, window_bounds = array<i64: 1, 16, 384>}, {transform_indices = @transform_6, window_bounds = array<i64: 1, 16, 2>}]} {
    %c0 = arith.constant 0 : index
    %c0_0 = arith.constant 0 : index
    %0 = vector.load %arg5[%c0, %c0_0] : memref<1x384xf32, #tpu.memory_space<vmem>>, vector<1x384xf32>
    %c0_1 = arith.constant 0 : index
    %c0_2 = arith.constant 0 : index
    %c0_3 = arith.constant 0 : index
    %1 = vector.load %arg1[%c0_1, %c0_2, %c0_3] : memref<1x16x384xbf16, #tpu.memory_space<vmem>>, vector<1x16x384xbf16>
    %2 = vector.shape_cast %1 : vector<1x16x384xbf16> to vector<16x384xbf16>
    %3 = arith.extf %2 : vector<16x384xbf16> to vector<16x384xf32>
    %c0_4 = arith.constant 0 : index
    %c0_5 = arith.constant 0 : index
    %4 = vector.load %arg3[%c0_4, %c0_5] : memref<16x1xf32, #tpu.memory_space<vmem>>, vector<16x1xf32>
    %5 = vector.broadcast %4 : vector<16x1xf32> to vector<16x384xf32>
    %6 = arith.mulf %3, %5 : vector<16x384xf32>
    %c0_6 = arith.constant 0 : index
    %c0_7 = arith.constant 0 : index
    %7 = vector.load %arg4[%c0_6, %c0_7] : memref<16x1xf32, #tpu.memory_space<vmem>>, vector<16x1xf32>
    %8 = vector.broadcast %7 : vector<16x1xf32> to vector<16x384xf32>
    %9 = arith.addf %6, %8 : vector<16x384xf32>
    %cst = arith.constant 0.000000e+00 : f32
    %10 = vector.broadcast %cst : f32 to vector<16x384xf32>
    %11 = arith.maximumf %9, %10 : vector<16x384xf32>
    %cst_8 = arith.constant 0.000000e+00 : f32
    %12 = vector.broadcast %cst_8 : f32 to vector<1x384xf32>
    %13 = arith.cmpf ogt, %0, %12 : vector<1x384xf32>
    %cst_9 = arith.constant 0.000000e+00 : f32
    %14 = vector.shape_cast %13 : vector<1x384xi1> to vector<1x384xi1>
    %15 = vector.broadcast %14 : vector<1x384xi1> to vector<16x384xi1>
    %16 = vector.broadcast %cst_9 : f32 to vector<16x384xf32>
    %17 = arith.select %15, %11, %16 : vector<16x384xi1>, vector<16x384xf32>
    %18 = arith.truncf %17 : vector<16x384xf32> to vector<16x384xbf16>
    %cst_10 = arith.constant 0.000000e+00 : bf16
    %19 = vector.broadcast %cst_10 : bf16 to vector<16x128xbf16>
    %20 = tpu.concatenate %19, %18, %19 in 1 : vector<16x128xbf16>, vector<16x384xbf16>, vector<16x128xbf16> -> vector<16x640xbf16>
    %21 = vector.extract_strided_slice %20 {offsets = [0, 109], sizes = [16, 384], strides = [1, 1]} : vector<16x640xbf16> to vector<16x384xbf16>
    %22 = vector.extract_strided_slice %20 {offsets = [0, 110], sizes = [16, 384], strides = [1, 1]} : vector<16x640xbf16> to vector<16x384xbf16>
    %23 = vector.extract_strided_slice %20 {offsets = [0, 111], sizes = [16, 384], strides = [1, 1]} : vector<16x640xbf16> to vector<16x384xbf16>
    %24 = vector.extract_strided_slice %20 {offsets = [0, 127], sizes = [16, 384], strides = [1, 1]} : vector<16x640xbf16> to vector<16x384xbf16>
    %25 = vector.extract_strided_slice %20 {offsets = [0, 128], sizes = [16, 384], strides = [1, 1]} : vector<16x640xbf16> to vector<16x384xbf16>
    %26 = vector.extract_strided_slice %20 {offsets = [0, 129], sizes = [16, 384], strides = [1, 1]} : vector<16x640xbf16> to vector<16x384xbf16>
    %27 = vector.extract_strided_slice %20 {offsets = [0, 145], sizes = [16, 384], strides = [1, 1]} : vector<16x640xbf16> to vector<16x384xbf16>
    %28 = vector.extract_strided_slice %20 {offsets = [0, 146], sizes = [16, 384], strides = [1, 1]} : vector<16x640xbf16> to vector<16x384xbf16>
    %29 = vector.extract_strided_slice %20 {offsets = [0, 147], sizes = [16, 384], strides = [1, 1]} : vector<16x640xbf16> to vector<16x384xbf16>
    %30 = tpu.concatenate %21, %22, %23, %24, %25, %26, %27, %28, %29 in 0 : vector<16x384xbf16>, vector<16x384xbf16>, vector<16x384xbf16>, vector<16x384xbf16>, vector<16x384xbf16>, vector<16x384xbf16>, vector<16x384xbf16>, vector<16x384xbf16>, vector<16x384xbf16> -> vector<144x384xbf16>
    %c0_11 = arith.constant 0 : index
    %c0_12 = arith.constant 0 : index
    %31 = vector.load %arg2[%c0_11, %c0_12] : memref<16x144xbf16, #tpu.memory_space<vmem>>, vector<16x144xbf16>
    %cst_13 = arith.constant dense<0.000000e+00> : vector<16x384xf32>
    %32 = tpu.matmul %31, %30, %cst_13 {dimension_numbers = #tpu.dot_dimension_numbers<[1], [0], [0], [1], [0, 0, 1, 1], [], []>} : vector<16x144xbf16>, vector<144x384xbf16>, vector<16x384xf32> -> vector<16x384xf32>
    %33 = arith.truncf %32 : vector<16x384xf32> to vector<16x384xbf16>
    %c0_14 = arith.constant 0 : index
    %c0_15 = arith.constant 0 : index
    %c0_16 = arith.constant 0 : index
    %34 = vector.load %arg6[%c0_14, %c0_15, %c0_16] : memref<1x16x384xbf16, #tpu.memory_space<vmem>>, vector<1x16x384xbf16>
    %35 = vector.shape_cast %34 : vector<1x16x384xbf16> to vector<16x384xbf16>
    %36 = vector.shape_cast %33 : vector<16x384xbf16> to vector<1x16x384xbf16>
    tpu.vector_store %arg6[%c0_14, %c0_15, %c0_16], %36 {strides = array<i32>} : memref<1x16x384xbf16, #tpu.memory_space<vmem>>, vector<1x16x384xbf16>,
    %37 = arith.extf %33 : vector<16x384xbf16> to vector<16x384xf32>
    %cst_17 = arith.constant 0.000000e+00 : f32
    %38 = vector.broadcast %cst_17 : f32 to vector<1x384xf32>
    %39 = arith.cmpf ogt, %0, %38 : vector<1x384xf32>
    %cst_18 = arith.constant 0.000000e+00 : f32
    %40 = vector.shape_cast %39 : vector<1x384xi1> to vector<1x384xi1>
    %41 = vector.broadcast %40 : vector<1x384xi1> to vector<16x384xi1>
    %42 = vector.broadcast %cst_18 : f32 to vector<16x384xf32>
    %43 = arith.select %41, %37, %42 : vector<16x384xi1>, vector<16x384xf32>
    %cst_19 = arith.constant dense<0.000000e+00> : vector<16xf32>
    %44 = vector.multi_reduction <add>, %43, %cst_19 [1] : vector<16x384xf32> to vector<16xf32>
    %45 = vector.shape_cast %44 : vector<16xf32> to vector<16x1xf32>
    %c0_20 = arith.constant 0 : index
    %c0_21 = arith.constant 0 : index
    %c0_22 = arith.constant 0 : index
    %46 = vector.load %arg7[%c0_20, %c0_21, %c0_22] : memref<1x16x2xf32, #tpu.memory_space<vmem>>, vector<1x16x1xf32>
    %47 = vector.shape_cast %46 : vector<1x16x1xf32> to vector<16x1xf32>
    %48 = vector.shape_cast %45 : vector<16x1xf32> to vector<1x16x1xf32>
    tpu.vector_store %arg7[%c0_20, %c0_21, %c0_22], %48 {strides = array<i32>} : memref<1x16x2xf32, #tpu.memory_space<vmem>>, vector<1x16x1xf32>,
    %49 = arith.mulf %43, %43 : vector<16x384xf32>
    %cst_23 = arith.constant dense<0.000000e+00> : vector<16xf32>
    %50 = vector.multi_reduction <add>, %49, %cst_23 [1] : vector<16x384xf32> to vector<16xf32>
    %51 = vector.shape_cast %50 : vector<16xf32> to vector<16x1xf32>
    %c0_24 = arith.constant 0 : index
    %c0_25 = arith.constant 0 : index
    %c1 = arith.constant 1 : index
    %52 = vector.load %arg7[%c0_24, %c0_25, %c1] : memref<1x16x2xf32, #tpu.memory_space<vmem>>, vector<1x16x1xf32>
    %53 = vector.shape_cast %52 : vector<1x16x1xf32> to vector<16x1xf32>
    %54 = vector.shape_cast %51 : vector<16x1xf32> to vector<1x16x1xf32>
    tpu.vector_store %arg7[%c0_24, %c0_25, %c1], %54 {strides = array<i32>} : memref<1x16x2xf32, #tpu.memory_space<vmem>>, vector<1x16x1xf32>,
    return
  }
  func.func @transform_0(%arg0: i32) -> (i32, i32, i32) {
    %c0_i32 = arith.constant 0 : i32
    %c0_i32_0 = arith.constant 0 : i32
    %c0_i32_1 = arith.constant 0 : i32
    return %arg0, %c0_i32, %c0_i32_0 : i32, i32, i32
  }
  func.func @transform_1(%arg0: i32) -> (i32, i32) {
    %c0_i32 = arith.constant 0 : i32
    %c0_i32_0 = arith.constant 0 : i32
    %c0_i32_1 = arith.constant 0 : i32
    return %c0_i32, %c0_i32_0 : i32, i32
  }
  func.func @transform_2(%arg0: i32) -> (i32, i32) {
    %c0_i32 = arith.constant 0 : i32
    %c0_i32_0 = arith.constant 0 : i32
    %c0_i32_1 = arith.constant 0 : i32
    return %c0_i32, %c0_i32_0 : i32, i32
  }
  func.func @transform_3(%arg0: i32) -> (i32, i32) {
    %c0_i32 = arith.constant 0 : i32
    %c0_i32_0 = arith.constant 0 : i32
    %c0_i32_1 = arith.constant 0 : i32
    return %c0_i32, %c0_i32_0 : i32, i32
  }
  func.func @transform_4(%arg0: i32) -> (i32, i32) {
    %c0_i32 = arith.constant 0 : i32
    %c0_i32_0 = arith.constant 0 : i32
    %c0_i32_1 = arith.constant 0 : i32
    return %c0_i32, %c0_i32_0 : i32, i32
  }
  func.func @transform_5(%arg0: i32) -> (i32, i32, i32) {
    %c0_i32 = arith.constant 0 : i32
    %c0_i32_0 = arith.constant 0 : i32
    %c0_i32_1 = arith.constant 0 : i32
    return %arg0, %c0_i32, %c0_i32_0 : i32, i32, i32
  }
  func.func @transform_6(%arg0: i32) -> (i32, i32, i32) {
    %c0_i32 = arith.constant 0 : i32
    %c0_i32_0 = arith.constant 0 : i32
    %c0_i32_1 = arith.constant 0 : i32
    return %arg0, %c0_i32, %c0_i32_0 : i32, i32, i32
  }
}

</mosaic_0001>

<llo_original>
// kernel: residual_block_forward.5
$region0: #{residual_block_forward.5}
  #allocation0 [shape = 'u32[]', space=smem, size = 0x4, offset = 0x4, fixed_abs, tag = 'smem constant byte address 0x4 - core index']
  #allocation1 [shape = 'u32[72,128]{1,0:T(1,128)}', space=vmem, size = 0x9000, scoped, tag = 'internal scratch']
  %s0 = inlined_call_operand.vmem [shape: bf16[2,16,384], index: 0, kind: input, shape index: {}]
  %s1 = inlined_call_operand.vmem [shape: f32[2,16,384], index: 1, kind: input, shape index: {}]
  %s2 = inlined_call_operand.vmem [shape: f32[16,1], index: 2, kind: input, shape index: {}]
  %s3 = inlined_call_operand.vmem [shape: f32[16,1], index: 3, kind: input, shape index: {}]
  %s4 = inlined_call_operand.vmem [shape: f32[2,16,384], index: 4, kind: output, shape index: {}]
  %s5 = sld [smem:[#allocation0]]
  $region49: #{residual_block_forward.5} parent=0
    _
  %s7 = ssub.s32 1, %s5
  %s8 = scalar_select 0, %s7, %s5
  loop: start=0, step=1, limit=4
  $region2: #{residual_block_forward.5} parent=0 // loop_pre_header
    _
  $region3: #{residual_block_forward.5} parent=0 // loop_header
    %s10 = sphi 0, %s14
    %p11 = scmp.ge.s32.totalorder %s10, 4
    %s20 = sphi 0, %s22
    %s23 = sphi 0, %s20
    %s24 = sphi 0, %s23
    %s40 = sphi 0, %s24
    %s46 = sphi 0, %s48
    %s49 = sphi 0, %s46
    %s50 = sphi 0, %s49
    %s66 = sphi 0, %s50
    %s70 = sphi 0, %s70
    %s72 = sphi 0, %s70
    %s73 = sphi 0, %s72
    %s87 = sphi 0, %s73
    %s91 = sphi 0, %s91
    %s93 = sphi 0, %s91
    %s94 = sphi 0, %s93
    %s108 = sphi 0, %s94
    %s114 = sphi 0, %s116
    %s117 = sphi 0, %s114
    %s118 = sphi 0, %s117
    %s134 = sphi 0, %s118
  $region4: #{residual_block_forward.5} parent=0 // loop_header_branch
    %13 = sbr.rel (%p11) target = $region8
  $region5: #{residual_block_forward.5} parent=0 // loop_body
    %s15 = ssub.s32 %s10, 1
    %s16 = ssub.s32 %s10, 2
    %s17 = sadd.s32 %s10, 1
    %s18 = ssub.s32 %s10, %s17
    %p19 = scmp.eq.s32.totalorder %s18, 0
    %s21 = sadd.s32 %s20, 1
    %s22 = scalar_select %p19, %s20, %s21
    %p25 = pneg %p19
    %p26 = scmp.eq.s32.totalorder %s10, 1
    %p27 = por %p25, %p26
    %p28 = scmp.ne.s32.totalorder %s20, %s23
    %p29 = scmp.eq.s32.totalorder %s10, 0
    %p30 = por %p28, %p29
    %p31 = scmp.ne.s32.totalorder %s20, %s23
    %p32 = scmp.eq.s32.totalorder %s15, 1
    %p33 = por %p31, %p32
    %p34 = scmp.ne.s32.totalorder %s23, %s24
    %p35 = scmp.eq.s32.totalorder %s15, 0
    %p36 = por %p34, %p35
    %p37 = scmp.ne.s32.totalorder %s23, %s24
    %p38 = scmp.eq.s32.totalorder %s16, 1
    %p39 = por %p37, %p38
    %p41 = scmp.ne.s32.totalorder %s24, %s40
    %p42 = scmp.eq.s32.totalorder %s16, 0
    %p43 = por %p41, %p42
    %s44 = ssub.s32 %s10, %s17
    %p45 = scmp.eq.s32.totalorder %s44, 0
    %s47 = sadd.s32 %s46, 1
    %s48 = scalar_select %p45, %s46, %s47
    %p51 = pneg %p45
    %p52 = scmp.eq.s32.totalorder %s10, 1
    %p53 = por %p51, %p52
    %p54 = scmp.ne.s32.totalorder %s46, %s49
    %p55 = scmp.eq.s32.totalorder %s10, 0
    %p56 = por %p54, %p55
    %p57 = scmp.ne.s32.totalorder %s46, %s49
    %p58 = scmp.eq.s32.totalorder %s15, 1
    %p59 = por %p57, %p58
    %p60 = scmp.ne.s32.totalorder %s49, %s50
    %p61 = scmp.eq.s32.totalorder %s15, 0
    %p62 = por %p60, %p61
    %p63 = scmp.ne.s32.totalorder %s49, %s50
    %p64 = scmp.eq.s32.totalorder %s16, 1
    %p65 = por %p63, %p64
    %p67 = scmp.ne.s32.totalorder %s50, %s66
    %p68 = scmp.eq.s32.totalorder %s16, 0
    %p69 = por %p67, %p68
    %s71 = sadd.s32 %s70, 1
    %p74 = scmp.eq.s32.totalorder %s10, 1
    %p75 = scmp.ne.s32.totalorder %s70, %s72
    %p76 = scmp.eq.s32.totalorder %s10, 0
    %p77 = por %p75, %p76
    %p78 = scmp.ne.s32.totalorder %s70, %s72
    %p79 = scmp.eq.s32.totalorder %s15, 1
    %p80 = por %p78, %p79
    %p81 = scmp.ne.s32.totalorder %s72, %s73
    %p82 = scmp.eq.s32.totalorder %s15, 0
    %p83 = por %p81, %p82
    %p84 = scmp.ne.s32.totalorder %s72, %s73
    %p85 = scmp.eq.s32.totalorder %s16, 1
    %p86 = por %p84, %p85
    %p88 = scmp.ne.s32.totalorder %s73, %s87
    %p89 = scmp.eq.s32.totalorder %s16, 0
    %p90 = por %p88, %p89
    %s92 = sadd.s32 %s91, 1
    %p95 = scmp.eq.s32.totalorder %s10, 1
    %p96 = scmp.ne.s32.totalorder %s91, %s93
    %p97 = scmp.eq.s32.totalorder %s10, 0
    %p98 = por %p96, %p97
    %p99 = scmp.ne.s32.totalorder %s91, %s93
    %p100 = scmp.eq.s32.totalorder %s15, 1
    %p101 = por %p99, %p100
    %p102 = scmp.ne.s32.totalorder %s93, %s94
    %p103 = scmp.eq.s32.totalorder %s15, 0
    %p104 = por %p102, %p103
    %p105 = scmp.ne.s32.totalorder %s93, %s94
    %p106 = scmp.eq.s32.totalorder %s16, 1
    %p107 = por %p105, %p106
    %p109 = scmp.ne.s32.totalorder %s94, %s108
    %p110 = scmp.eq.s32.totalorder %s16, 0
    %p111 = por %p109, %p110
    %s112 = ssub.s32 %s10, %s17
    %p113 = scmp.eq.s32.totalorder %s112, 0
    %s115 = sadd.s32 %s114, 1
    %s116 = scalar_select %p113, %s114, %s115
    %p119 = pneg %p113
    %p120 = scmp.eq.s32.totalorder %s10, 1
    %p121 = por %p119, %p120
    %p122 = scmp.ne.s32.totalorder %s114, %s117
    %p123 = scmp.eq.s32.totalorder %s10, 0
    %p124 = por %p122, %p123
    %p125 = scmp.ne.s32.totalorder %s114, %s117
    %p126 = scmp.eq.s32.totalorder %s15, 1
    %p127 = por %p125, %p126
    %p128 = scmp.ne.s32.totalorder %s117, %s118
    %p129 = scmp.eq.s32.totalorder %s15, 0
    %p130 = por %p128, %p129
    %p131 = scmp.ne.s32.totalorder %s117, %s118
    %p132 = scmp.eq.s32.totalorder %s16, 1
    %p133 = por %p131, %p132
    %p135 = scmp.ne.s32.totalorder %s118, %s134
    %p136 = scmp.eq.s32.totalorder %s16, 0
    %p137 = por %p135, %p136
    %p138 = scmp.le.s32.totalorder 1, %s10
    %p139 = scmp.lt.s32.totalorder %s10, 3
    %p140 = pnand %p138, %p139
    %p141 = pneg %p140
    // Predicated region
    $region9: #{residual_block_forward.5} parent=5 // pred_check
      _
    $region10: #{residual_block_forward.5} parent=5 // pred_check_branch
      %143 = sbr.rel (%p140) target = $region12
    $region11: #{residual_block_forward.5} parent=5 // pred_region
      %s144 = ssub.s32 %s10, 1
      // Predicated region
      $region13: #{residual_block_forward.5} parent=11 // pred_check
        %p145 = pneg %p83
      $region14: #{residual_block_forward.5} parent=11 // pred_check_branch
        %147 = sbr.rel (%p145) target = $region16
      $region15: #{residual_block_forward.5} parent=11 // pred_region
        _
      $region16: #{residual_block_forward.5} parent=11 // pred_fallthru
        _
      // Predicated region
      $region17: #{residual_block_forward.5} parent=11 // pred_check
        %p148 = pneg %p104
      $region18: #{residual_block_forward.5} parent=11 // pred_check_branch
        %150 = sbr.rel (%p148) target = $region20
      $region19: #{residual_block_forward.5} parent=11 // pred_region
        _
      $region20: #{residual_block_forward.5} parent=11 // pred_fallthru
        _
    $region12: #{residual_block_forward.5} parent=5 // pred_fallthru
      _
    %p151 = scmp.lt.s32.totalorder %s10, 2
    // Predicated region
    $region21: #{residual_block_forward.5} parent=5 // pred_check
      %p152 = pneg %p151
    $region22: #{residual_block_forward.5} parent=5 // pred_check_branch
      %154 = sbr.rel (%p152) target = $region24
    $region23: #{residual_block_forward.5} parent=5 // pred_region
      // Predicated region
      $region25: #{residual_block_forward.5} parent=23 // pred_check
        %p155 = pneg %p30
      $region26: #{residual_block_forward.5} parent=23 // pred_check_branch
        %157 = sbr.rel (%p155) target = $region28
      $region27: #{residual_block_forward.5} parent=23 // pred_region
        %p158 = scmp.lt.s32.totalorder %s10, 1
        %s159 = scalar_select %p158, %s10, 1
        %s160 = smul.addr %s159, 6
        %s161 = smul.addr %s160, 4
        %s162 = scalar_lea.vmem %s0, %s161
      $region28: #{residual_block_forward.5} parent=23 // pred_fallthru
        _
      // Predicated region
      $region29: #{residual_block_forward.5} parent=23 // pred_check
        %p163 = pneg %p56
      $region30: #{residual_block_forward.5} parent=23 // pred_check_branch
        %165 = sbr.rel (%p163) target = $region32
      $region31: #{residual_block_forward.5} parent=23 // pred_region
        %p166 = scmp.lt.s32.totalorder %s10, 1
        %s167 = scalar_select %p166, %s10, 1
        %s168 = smul.addr %s167, 6
        %s169 = smul.addr %s168, 8
        %s170 = scalar_lea.vmem %s1, %s169
      $region32: #{residual_block_forward.5} parent=23 // pred_fallthru
        _
    $region24: #{residual_block_forward.5} parent=5 // pred_fallthru
      _
    %p171 = scmp.le.s32.totalorder 1, %s10
    %p172 = scmp.lt.s32.totalorder %s10, 3
    %p173 = pnand %p171, %p172
    %p174 = pneg %p173
    // Predicated region
    $region33: #{residual_block_forward.5} parent=5 // pred_check
      _
    $region34: #{residual_block_forward.5} parent=5 // pred_check_branch
      %176 = sbr.rel (%p173) target = $region36
    $region35: #{residual_block_forward.5} parent=5 // pred_region
      %s177 = ssub.s32 %s10, 1
      %p178 = scmp.lt.s32.totalorder %s15, 1
      %s179 = scalar_select %p178, %s15, 1
      %s180 = smul.addr %s179, 6
      %s181 = smul.addr %s180, 4
      %s182 = scalar_lea.vmem %s0, %s181
      %p183 = pneg %p36
      %p184 = pneg %p33
      %p185 = scmp.lt.s32.totalorder %s15, 1
      %s186 = scalar_select %p185, %s15, 1
      %s187 = smul.addr %s186, 6
      %s188 = smul.addr %s187, 8
      %s189 = scalar_lea.vmem %s1, %s188
      %p190 = pneg %p62
      %p191 = pneg %p59
      %p192 = pneg %p83
      %p193 = pneg %p80
      %p194 = pneg %p104
      %p195 = pneg %p101
      %p196 = pneg %p130
      %p197 = pneg %p127
      %p198 = scmp.lt.s32.totalorder %s15, 1
      %s199 = scalar_select %p198, %s15, 1
      %s200 = smul.addr %s199, 6
      %s201 = smul.addr %s200, 8
      %s202 = scalar_lea.vmem %s4, %s201
      %p203 = scmp.lt.s32.totalorder %s15, 1
      %s204 = scalar_select %p203, %s15, 1
      %s205 = smul.addr %s204, 6
      %s206 = smul.addr %s205, 4
      %s207 = scalar_lea.vmem %s0, %s206
      %p208 = scmp.lt.s32.totalorder %s15, 1
      %s209 = scalar_select %p208, %s15, 1
      %s210 = smul.addr %s209, 6
      %s211 = smul.addr %s210, 8
      %s212 = scalar_lea.vmem %s1, %s211
      %p213 = scmp.lt.s32.totalorder %s15, 1
      %s214 = scalar_select %p213, %s15, 1
      %s215 = smul.addr %s214, 6
      %s216 = smul.addr %s215, 8
      %s217 = scalar_lea.vmem %s4, %s216
      %v218 = vld [vmem:[%s207] sm:$0xff]
      %v219 = vld [vmem:[%s207 + $0x8] sm:$0xf]
      %v220 = vld [vmem:[%s207 + $0xc] sm:$0xff]
      %v221 = vld [vmem:[%s207 + $0x14] sm:$0xf]
      %v222 = vunpack.c.l.bf16 %v218
      %v223 = vunpack.c.h.bf16 %v218
      %v224 = vunpack.c.l.bf16 %v219
      %v225 = vunpack.c.l.bf16 %v220
      %v226 = vunpack.c.h.bf16 %v220
      %v227 = vunpack.c.l.bf16 %v221
      %v228 = vld [vmem:[%s2] sm:$0xff]
      %v229 = vld [vmem:[%s2 + $0x8] sm:$0xff]
      %231 = vset.pattern.permute.xlu0 0
      %232 = vperm.xlu0 %231, %v228
      %v233 = vpop.permute.xlu0 %232
      %236 = vset.pattern.permute.xlu0 0
      %237 = vperm.xlu0 %236, %v229
      %v238 = vpop.permute.xlu0 %237
      %v240 = vmul.f32 %v222, %v233
      %v241 = vmul.f32 %v223, %v233
      %v242 = vmul.f32 %v224, %v233
      %v243 = vmul.f32 %v225, %v238
      %v244 = vmul.f32 %v226, %v238
      %v245 = vmul.f32 %v227, %v238
      %v246 = vld [vmem:[%s3] sm:$0xff]
      %v247 = vld [vmem:[%s3 + $0x8] sm:$0xff]
      %249 = vset.pattern.permute.xlu0 0
      %250 = vperm.xlu0 %249, %v246
      %v251 = vpop.permute.xlu0 %250
      %254 = vset.pattern.permute.xlu0 0
      %255 = vperm.xlu0 %254, %v247
      %v256 = vpop.permute.xlu0 %255
      %v258 = vadd.f32 %v240, %v251
      %v259 = vadd.f32 %v241, %v251
      %v260 = vadd.f32 %v242, %v251
      %v261 = vadd.f32 %v243, %v256
      %v262 = vadd.f32 %v244, %v256
      %v263 = vadd.f32 %v245, %v256
      %v264 = vld [vmem:[%s212] sm:$0xff]
      %v265 = vld [vmem:[%s212 + $0x8] sm:$0xff]
      %v266 = vld [vmem:[%s212 + $0x10] sm:$0xff]
      %v267 = vld [vmem:[%s212 + $0x18] sm:$0xff]
      %v268 = vld [vmem:[%s212 + $0x20] sm:$0xff]
      %v269 = vld [vmem:[%s212 + $0x28] sm:$0xff]
      %v270 = vadd.f32 %v258, %v264
      %v271 = vadd.f32 %v259, %v265
      %v272 = vadd.f32 %v260, %v266
      %v273 = vadd.f32 %v261, %v267
      %v274 = vadd.f32 %v262, %v268
      %v275 = vadd.f32 %v263, %v269
      %v276 = vmax.f32 %v270, 0.0
      %v277 = vmax.f32 %v271, 0.0
      %v278 = vmax.f32 %v272, 0.0
      %v279 = vmax.f32 %v273, 0.0
      %v280 = vmax.f32 %v274, 0.0
      %v281 = vmax.f32 %v275, 0.0
      %282 = vst [vmem:[%s217] sm:$0xff] %v276
      %283 = vst [vmem:[%s217 + $0x8] sm:$0xff] %v277
      %284 = vst [vmem:[%s217 + $0x10] sm:$0xff] %v278
      %285 = vst [vmem:[%s217 + $0x18] sm:$0xff] %v279
      %286 = vst [vmem:[%s217 + $0x20] sm:$0xff] %v280
      %287 = vst [vmem:[%s217 + $0x28] sm:$0xff] %v281
      %p288 = scmp.lt.s32.totalorder %s15, 1
      %s289 = scalar_select %p288, %s15, 1
      %s290 = smul.addr %s289, 6
      %s291 = smul.addr %s290, 8
      %s292 = scalar_lea.vmem %s4, %s291
      // Predicated region
      $region37: #{residual_block_forward.5} parent=35 // pred_check
        %p293 = pneg %p127
      $region38: #{residual_block_forward.5} parent=35 // pred_check_branch
        %295 = sbr.rel (%p293) target = $region40
      $region39: #{residual_block_forward.5} parent=35 // pred_region
        _
      $region40: #{residual_block_forward.5} parent=35 // pred_fallthru
        _
    $region36: #{residual_block_forward.5} parent=5 // pred_fallthru
      _
    %p296 = scmp.le.s32.totalorder 2, %s10
    // Predicated region
    $region41: #{residual_block_forward.5} parent=5 // pred_check
      %p297 = pneg %p296
    $region42: #{residual_block_forward.5} parent=5 // pred_check_branch
      %299 = sbr.rel (%p297) target = $region44
    $region43: #{residual_block_forward.5} parent=5 // pred_region
      %s300 = ssub.s32 %s10, 2
      // Predicated region
      $region45: #{residual_block_forward.5} parent=43 // pred_check
        %p301 = pneg %p133
      $region46: #{residual_block_forward.5} parent=43 // pred_check_branch
        %303 = sbr.rel (%p301) target = $region48
      $region47: #{residual_block_forward.5} parent=43 // pred_region
        %p304 = scmp.lt.s32.totalorder %s16, 1
        %s305 = scalar_select %p304, %s16, 1
        %s306 = smul.addr %s305, 6
        %s307 = smul.addr %s306, 8
        %s308 = scalar_lea.vmem %s4, %s307
      $region48: #{residual_block_forward.5} parent=43 // pred_fallthru
        _
    $region44: #{residual_block_forward.5} parent=5 // pred_fallthru
      _
  $region6: #{residual_block_forward.5} parent=0 // loop_footer
    %s14 = sadd.s32 1, %s10
  $region7: #{residual_block_forward.5} parent=0 // loop_footer_branch
    %9 = sbr.rel target = $region3
  $region8: #{residual_block_forward.5} parent=0 // loop_exit
    _

// kernel: residual_block_forward.3
$region0: #{residual_block_forward.3}
  #allocation0 [shape = 'u32[]', space=smem, size = 0x4, offset = 0x4, fixed_abs, tag = 'smem constant byte address 0x4 - core index']
  #allocation1 [shape = 'u32[72,128]{1,0:T(1,128)}', space=vmem, size = 0x9000, scoped, tag = 'internal scratch']
  %s0 = inlined_call_operand.vmem [shape: f32[2,16,384], index: 0, kind: input, shape index: {}]
  %s1 = inlined_call_operand.vmem [shape: bf16[16,144], index: 1, kind: input, shape index: {}]
  %s2 = inlined_call_operand.vmem [shape: f32[1,384], index: 2, kind: input, shape index: {}]
  %s3 = inlined_call_operand.vmem [shape: bf16[2,16,384], index: 3, kind: output, shape index: {0}]
  %s4 = inlined_call_operand.vmem [shape: f32[2,16,2], index: 4, kind: output, shape index: {1}]
  %5 = xla_tuple %s3, %s4
  %s6 = sld [smem:[#allocation0]]
  $region53: #{residual_block_forward.3} parent=0
    _
  %s8 = ssub.s32 1, %s6
  %s9 = scalar_select 0, %s8, %s6
  loop: start=0, step=1, limit=4
  $region2: #{residual_block_forward.3} parent=0 // loop_pre_header
    _
  $region3: #{residual_block_forward.3} parent=0 // loop_header
    %s11 = sphi 0, %s15
    %p12 = scmp.ge.s32.totalorder %s11, 4
    %s21 = sphi 0, %s23
    %s24 = sphi 0, %s21
    %s25 = sphi 0, %s24
    %s41 = sphi 0, %s25
    %s45 = sphi 0, %s45
    %s47 = sphi 0, %s45
    %s48 = sphi 0, %s47
    %s62 = sphi 0, %s48
    %s66 = sphi 0, %s66
    %s68 = sphi 0, %s66
    %s69 = sphi 0, %s68
    %s83 = sphi 0, %s69
    %s89 = sphi 0, %s91
    %s92 = sphi 0, %s89
    %s93 = sphi 0, %s92
    %s109 = sphi 0, %s93
    %s115 = sphi 0, %s117
    %s118 = sphi 0, %s115
    %s119 = sphi 0, %s118
    %s135 = sphi 0, %s119
  $region4: #{residual_block_forward.3} parent=0 // loop_header_branch
    %14 = sbr.rel (%p12) target = $region8
  $region5: #{residual_block_forward.3} parent=0 // loop_body
    %s16 = ssub.s32 %s11, 1
    %s17 = ssub.s32 %s11, 2
    %s18 = sadd.s32 %s11, 1
    %s19 = ssub.s32 %s11, %s18
    %p20 = scmp.eq.s32.totalorder %s19, 0
    %s22 = sadd.s32 %s21, 1
    %s23 = scalar_select %p20, %s21, %s22
    %p26 = pneg %p20
    %p27 = scmp.eq.s32.totalorder %s11, 1
    %p28 = por %p26, %p27
    %p29 = scmp.ne.s32.totalorder %s21, %s24
    %p30 = scmp.eq.s32.totalorder %s11, 0
    %p31 = por %p29, %p30
    %p32 = scmp.ne.s32.totalorder %s21, %s24
    %p33 = scmp.eq.s32.totalorder %s16, 1
    %p34 = por %p32, %p33
    %p35 = scmp.ne.s32.totalorder %s24, %s25
    %p36 = scmp.eq.s32.totalorder %s16, 0
    %p37 = por %p35, %p36
    %p38 = scmp.ne.s32.totalorder %s24, %s25
    %p39 = scmp.eq.s32.totalorder %s17, 1
    %p40 = por %p38, %p39
    %p42 = scmp.ne.s32.totalorder %s25, %s41
    %p43 = scmp.eq.s32.totalorder %s17, 0
    %p44 = por %p42, %p43
    %s46 = sadd.s32 %s45, 1
    %p49 = scmp.eq.s32.totalorder %s11, 1
    %p50 = scmp.ne.s32.totalorder %s45, %s47
    %p51 = scmp.eq.s32.totalorder %s11, 0
    %p52 = por %p50, %p51
    %p53 = scmp.ne.s32.totalorder %s45, %s47
    %p54 = scmp.eq.s32.totalorder %s16, 1
    %p55 = por %p53, %p54
    %p56 = scmp.ne.s32.totalorder %s47, %s48
    %p57 = scmp.eq.s32.totalorder %s16, 0
    %p58 = por %p56, %p57
    %p59 = scmp.ne.s32.totalorder %s47, %s48
    %p60 = scmp.eq.s32.totalorder %s17, 1
    %p61 = por %p59, %p60
    %p63 = scmp.ne.s32.totalorder %s48, %s62
    %p64 = scmp.eq.s32.totalorder %s17, 0
    %p65 = por %p63, %p64
    %s67 = sadd.s32 %s66, 1
    %p70 = scmp.eq.s32.totalorder %s11, 1
    %p71 = scmp.ne.s32.totalorder %s66, %s68
    %p72 = scmp.eq.s32.totalorder %s11, 0
    %p73 = por %p71, %p72
    %p74 = scmp.ne.s32.totalorder %s66, %s68
    %p75 = scmp.eq.s32.totalorder %s16, 1
    %p76 = por %p74, %p75
    %p77 = scmp.ne.s32.totalorder %s68, %s69
    %p78 = scmp.eq.s32.totalorder %s16, 0
    %p79 = por %p77, %p78
    %p80 = scmp.ne.s32.totalorder %s68, %s69
    %p81 = scmp.eq.s32.totalorder %s17, 1
    %p82 = por %p80, %p81
    %p84 = scmp.ne.s32.totalorder %s69, %s83
    %p85 = scmp.eq.s32.totalorder %s17, 0
    %p86 = por %p84, %p85
    %s87 = ssub.s32 %s11, %s18
    %p88 = scmp.eq.s32.totalorder %s87, 0
    %s90 = sadd.s32 %s89, 1
    %s91 = scalar_select %p88, %s89, %s90
    %p94 = pneg %p88
    %p95 = scmp.eq.s32.totalorder %s11, 1
    %p96 = por %p94, %p95
    %p97 = scmp.ne.s32.totalorder %s89, %s92
    %p98 = scmp.eq.s32.totalorder %s11, 0
    %p99 = por %p97, %p98
    %p100 = scmp.ne.s32.totalorder %s89, %s92
    %p101 = scmp.eq.s32.totalorder %s16, 1
    %p102 = por %p100, %p101
    %p103 = scmp.ne.s32.totalorder %s92, %s93
    %p104 = scmp.eq.s32.totalorder %s16, 0
    %p105 = por %p103, %p104
    %p106 = scmp.ne.s32.totalorder %s92, %s93
    %p107 = scmp.eq.s32.totalorder %s17, 1
    %p108 = por %p106, %p107
    %p110 = scmp.ne.s32.totalorder %s93, %s109
    %p111 = scmp.eq.s32.totalorder %s17, 0
    %p112 = por %p110, %p111
    %s113 = ssub.s32 %s11, %s18
    %p114 = scmp.eq.s32.totalorder %s113, 0
    %s116 = sadd.s32 %s115, 1
    %s117 = scalar_select %p114, %s115, %s116
    %p120 = pneg %p114
    %p121 = scmp.eq.s32.totalorder %s11, 1
    %p122 = por %p120, %p121
    %p123 = scmp.ne.s32.totalorder %s115, %s118
    %p124 = scmp.eq.s32.totalorder %s11, 0
    %p125 = por %p123, %p124
    %p126 = scmp.ne.s32.totalorder %s115, %s118
    %p127 = scmp.eq.s32.totalorder %s16, 1
    %p128 = por %p126, %p127
    %p129 = scmp.ne.s32.totalorder %s118, %s119
    %p130 = scmp.eq.s32.totalorder %s16, 0
    %p131 = por %p129, %p130
    %p132 = scmp.ne.s32.totalorder %s118, %s119
    %p133 = scmp.eq.s32.totalorder %s17, 1
    %p134 = por %p132, %p133
    %p136 = scmp.ne.s32.totalorder %s119, %s135
    %p137 = scmp.eq.s32.totalorder %s17, 0
    %p138 = por %p136, %p137
    %p139 = scmp.le.s32.totalorder 1, %s11
    %p140 = scmp.lt.s32.totalorder %s11, 3
    %p141 = pnand %p139, %p140
    %p142 = pneg %p141
    // Predicated region
    $region9: #{residual_block_forward.3} parent=5 // pred_check
      _
    $region10: #{residual_block_forward.3} parent=5 // pred_check_branch
      %144 = sbr.rel (%p141) target = $region12
    $region11: #{residual_block_forward.3} parent=5 // pred_region
      %s145 = ssub.s32 %s11, 1
      // Predicated region
      $region13: #{residual_block_forward.3} parent=11 // pred_check
        %p146 = pneg %p58
      $region14: #{residual_block_forward.3} parent=11 // pred_check_branch
        %148 = sbr.rel (%p146) target = $region16
      $region15: #{residual_block_forward.3} parent=11 // pred_region
        _
      $region16: #{residual_block_forward.3} parent=11 // pred_fallthru
        _
      // Predicated region
      $region17: #{residual_block_forward.3} parent=11 // pred_check
        %p149 = pneg %p79
      $region18: #{residual_block_forward.3} parent=11 // pred_check_branch
        %151 = sbr.rel (%p149) target = $region20
      $region19: #{residual_block_forward.3} parent=11 // pred_region
        _
      $region20: #{residual_block_forward.3} parent=11 // pred_fallthru
        _
    $region12: #{residual_block_forward.3} parent=5 // pred_fallthru
      _
    %p152 = scmp.lt.s32.totalorder %s11, 2
    // Predicated region
    $region21: #{residual_block_forward.3} parent=5 // pred_check
      %p153 = pneg %p152
    $region22: #{residual_block_forward.3} parent=5 // pred_check_branch
      %155 = sbr.rel (%p153) target = $region24
    $region23: #{residual_block_forward.3} parent=5 // pred_region
      // Predicated region
      $region25: #{residual_block_forward.3} parent=23 // pred_check
        %p156 = pneg %p31
      $region26: #{residual_block_forward.3} parent=23 // pred_check_branch
        %158 = sbr.rel (%p156) target = $region28
      $region27: #{residual_block_forward.3} parent=23 // pred_region
        %p159 = scmp.lt.s32.totalorder %s11, 1
        %s160 = scalar_select %p159, %s11, 1
        %s161 = smul.addr %s160, 6
        %s162 = smul.addr %s161, 8
        %s163 = scalar_lea.vmem %s0, %s162
      $region28: #{residual_block_forward.3} parent=23 // pred_fallthru
        _
    $region24: #{residual_block_forward.3} parent=5 // pred_fallthru
      _
    %p164 = scmp.le.s32.totalorder 1, %s11
    %p165 = scmp.lt.s32.totalorder %s11, 3
    %p166 = pnand %p164, %p165
    %p167 = pneg %p166
    // Predicated region
    $region29: #{residual_block_forward.3} parent=5 // pred_check
      _
    $region30: #{residual_block_forward.3} parent=5 // pred_check_branch
      %169 = sbr.rel (%p166) target = $region32
    $region31: #{residual_block_forward.3} parent=5 // pred_region
      %s170 = ssub.s32 %s11, 1
      %p171 = scmp.lt.s32.totalorder %s16, 1
      %s172 = scalar_select %p171, %s16, 1
      %s173 = smul.addr %s172, 6
      %s174 = smul.addr %s173, 8
      %s175 = scalar_lea.vmem %s0, %s174
      %p176 = pneg %p37
      %p177 = pneg %p34
      %p178 = pneg %p58
      %p179 = pneg %p55
      %p180 = pneg %p79
      %p181 = pneg %p76
      %p182 = pneg %p105
      %p183 = pneg %p102
      %p184 = scmp.lt.s32.totalorder %s16, 1
      %s185 = scalar_select %p184, %s16, 1
      %s186 = smul.addr %s185, 6
      %s187 = smul.addr %s186, 4
      %s188 = scalar_lea.vmem %s3, %s187
      %p189 = pneg %p131
      %p190 = pneg %p128
      %p191 = scmp.lt.s32.totalorder %s16, 1
      %s192 = scalar_select %p191, %s16, 1
      %s193 = smul.addr %s192, 2
      %s194 = smul.addr %s193, 8
      %s195 = scalar_lea.vmem %s4, %s194
      %p196 = scmp.lt.s32.totalorder %s16, 1
      %s197 = scalar_select %p196, %s16, 1
      %s198 = smul.addr %s197, 6
      %s199 = smul.addr %s198, 8
      %s200 = scalar_lea.vmem %s0, %s199
      %p201 = scmp.lt.s32.totalorder %s16, 1
      %s202 = scalar_select %p201, %s16, 1
      %s203 = smul.addr %s202, 6
      %s204 = smul.addr %s203, 4
      %s205 = scalar_lea.vmem %s3, %s204
      %p206 = scmp.lt.s32.totalorder %s16, 1
      %s207 = scalar_select %p206, %s16, 1
      %s208 = smul.addr %s207, 2
      %s209 = smul.addr %s208, 8
      %s210 = scalar_lea.vmem %s4, %s209
      %v212 = vld [vmem:[%s200] sm:$0xff]
      %v213 = vld [vmem:[%s200 + $0x8] sm:$0xff]
      %v214 = vld [vmem:[%s200 + $0x10] sm:$0xff]
      %v215 = vld [vmem:[%s200 + $0x18] sm:$0xff]
      %v216 = vld [vmem:[%s200 + $0x20] sm:$0xff]
      %v217 = vld [vmem:[%s200 + $0x28] sm:$0xff]
      %v218 = vpack.c.bf16 %v213, %v212
      %v219 = vpack.c.bf16 %v214, %v214
      %v220 = vpack.c.bf16 %v216, %v215
      %v221 = vpack.c.bf16 %v217, %v217
      %v226 = vunpack.c.l.b16 %v218
      %v227 = vunpack.c.h.b16 %v218
      %v228 = vunpack.c.l.b16 %v219
      %v229 = vunpack.c.l.b16 %v220
      %v230 = vunpack.c.h.b16 %v220
      %v231 = vunpack.c.l.b16 %v221
      %v232 = vpack.c.b16 %v229, %v226
      %v233 = vpack.c.b16 %v230, %v227
      %v234 = vpack.c.b16 %v231, %v228
      %236 = vrot.lane.b32.xlu0 0, 127
      %v237 = vpop.permute.xlu0 %236
      %238 = vrot.lane.b32.xlu0 %v232, 127
      %v239 = vpop.permute.xlu0 %238
      %240 = vrot.lane.b32.xlu0 %v233, 127
      %v241 = vpop.permute.xlu0 %240
      %242 = vrot.lane.b32.xlu0 %v234, 127
      %v243 = vpop.permute.xlu0 %242
      %vm244 = vcmask 1039360
      %v245 = vsel %vm244, %v237, %v239
      %v246 = vsel %vm244, %v239, %v241
      %v247 = vsel %vm244, %v241, %v243
      %248 = vrot.lane.b32.xlu0 0, 126
      %v249 = vpop.permute.xlu0 %248
      %250 = vrot.lane.b32.xlu0 %v232, 126
      %v251 = vpop.permute.xlu0 %250
      %252 = vrot.lane.b32.xlu0 %v233, 126
      %v253 = vpop.permute.xlu0 %252
      %254 = vrot.lane.b32.xlu0 %v234, 126
      %v255 = vpop.permute.xlu0 %254
      %vm256 = vcmask 1031168
      %v257 = vsel %vm256, %v249, %v251
      %v258 = vsel %vm256, %v251, %v253
      %v259 = vsel %vm256, %v253, %v255
      %260 = vrot.lane.b32.xlu0 0, 110
      %v261 = vpop.permute.xlu0 %260
      %262 = vrot.lane.b32.xlu0 %v232, 110
      %v263 = vpop.permute.xlu0 %262
      %264 = vrot.lane.b32.xlu0 %v233, 110
      %v265 = vpop.permute.xlu0 %264
      %266 = vrot.lane.b32.xlu0 %v234, 110
      %v267 = vpop.permute.xlu0 %266
      %vm268 = vcmask 900096
      %v269 = vsel %vm268, %v261, %v263
      %v270 = vsel %vm268, %v263, %v265
      %v271 = vsel %vm268, %v265, %v267
      %272 = vrot.lane.b32.xlu0 %v232, 109
      %v273 = vpop.permute.xlu0 %272
      %274 = vrot.lane.b32.xlu0 %v233, 109
      %v275 = vpop.permute.xlu0 %274
      %276 = vrot.lane.b32.xlu0 %v234, 109
      %v277 = vpop.permute.xlu0 %276
      %vm278 = vcmask 891904
      %v279 = vsel %vm278, %v273, %v275
      %v280 = vsel %vm278, %v275, %v277
      %281 = vrot.lane.b32.xlu0 %v232, 108
      %v282 = vpop.permute.xlu0 %281
      %283 = vrot.lane.b32.xlu0 %v233, 108
      %v284 = vpop.permute.xlu0 %283
      %285 = vrot.lane.b32.xlu0 %v234, 108
      %v286 = vpop.permute.xlu0 %285
      %287 = vrot.lane.b32.xlu0 0, 108
      %v288 = vpop.permute.xlu0 %287
      %vm289 = vcmask 883712
      %v290 = vsel %vm289, %v282, %v284
      %v291 = vsel %vm289, %v284, %v286
      %v292 = vsel %vm289, %v286, %v288
      %293 = vrot.lane.b32.xlu0 %v232, 92
      %v294 = vpop.permute.xlu0 %293
      %295 = vrot.lane.b32.xlu0 %v233, 92
      %v296 = vpop.permute.xlu0 %295
      %297 = vrot.lane.b32.xlu0 %v234, 92
      %v298 = vpop.permute.xlu0 %297
      %299 = vrot.lane.b32.xlu0 0, 92
      %v300 = vpop.permute.xlu0 %299
      %vm301 = vcmask 752640
      %v302 = vsel %vm301, %v294, %v296
      %v303 = vsel %vm301, %v296, %v298
      %v304 = vsel %vm301, %v298, %v300
      %305 = vrot.lane.b32.xlu0 %v232, 91
      %v306 = vpop.permute.xlu0 %305
      %307 = vrot.lane.b32.xlu0 %v233, 91
      %v308 = vpop.permute.xlu0 %307
      %309 = vrot.lane.b32.xlu0 %v234, 91
      %v310 = vpop.permute.xlu0 %309
      %311 = vrot.lane.b32.xlu0 0, 91
      %v312 = vpop.permute.xlu0 %311
      %vm313 = vcmask 744448
      %v314 = vsel %vm313, %v306, %v308
      %v315 = vsel %vm313, %v308, %v310
      %v316 = vsel %vm313, %v310, %v312
      %317 = vrot.lane.b32.xlu0 %v232, 90
      %v318 = vpop.permute.xlu0 %317
      %319 = vrot.lane.b32.xlu0 %v233, 90
      %v320 = vpop.permute.xlu0 %319
      %321 = vrot.lane.b32.xlu0 %v234, 90
      %v322 = vpop.permute.xlu0 %321
      %323 = vrot.lane.b32.xlu0 0, 90
      %v324 = vpop.permute.xlu0 %323
      %vm325 = vcmask 736256
      %v326 = vsel %vm325, %v318, %v320
      %v327 = vsel %vm325, %v320, %v322
      %v328 = vsel %vm325, %v322, %v324
      %v329 = vld [vmem:[%s1] sm:$0xff]
      %v330 = vld [vmem:[%s1 + $0x8] sm:$0xff]
      %v333 = vunpack.c.l.b16 %v329
      %v334 = vunpack.c.h.b16 %v329
      %v335 = vunpack.c.l.b16 %v330
      %v336 = vunpack.c.h.b16 %v330
      %v337 = vpack.c.b16 %v335, %v333
      %v338 = vpack.c.b16 %v336, %v334
      %340 = vrot.lane.b32.xlu0 0, 19
      %v341 = vpop.permute.xlu0 %340
      %342 = vrot.lane.b32.xlu0 %v232, 19
      %v343 = vpop.permute.xlu0 %342
      %344 = vrot.lane.b32.xlu0 %v233, 19
      %v345 = vpop.permute.xlu0 %344
      %346 = vrot.lane.b32.xlu0 %v234, 19
      %v347 = vpop.permute.xlu0 %346
      %348 = vrot.lane.b32.xlu0 %v245, 19
      %v349 = vpop.permute.xlu0 %348
      %350 = vrot.lane.b32.xlu0 %v246, 19
      %v351 = vpop.permute.xlu0 %350
      %352 = vrot.lane.b32.xlu0 %v247, 19
      %v353 = vpop.permute.xlu0 %352
      %354 = vrot.lane.b32.xlu0 %v243, 19
      %v355 = vpop.permute.xlu0 %354
      %356 = vrot.lane.b32.xlu0 %v257, 19
      %v357 = vpop.permute.xlu0 %356
      %358 = vrot.lane.b32.xlu0 %v258, 19
      %v359 = vpop.permute.xlu0 %358
      %360 = vrot.lane.b32.xlu0 %v259, 19
      %v361 = vpop.permute.xlu0 %360
      %362 = vrot.lane.b32.xlu0 %v255, 19
      %v363 = vpop.permute.xlu0 %362
      %364 = vrot.lane.b32.xlu0 %v269, 19
      %v365 = vpop.permute.xlu0 %364
      %366 = vrot.lane.b32.xlu0 %v270, 19
      %v367 = vpop.permute.xlu0 %366
      %368 = vrot.lane.b32.xlu0 %v271, 19
      %v369 = vpop.permute.xlu0 %368
      %370 = vrot.lane.b32.xlu0 %v267, 19
      %v371 = vpop.permute.xlu0 %370
      %372 = vrot.lane.b32.xlu0 %v273, 19
      %v373 = vpop.permute.xlu0 %372
      %374 = vrot.lane.b32.xlu0 %v279, 19
      %v375 = vpop.permute.xlu0 %374
      %376 = vrot.lane.b32.xlu0 %v280, 19
      %v377 = vpop.permute.xlu0 %376
      %378 = vrot.lane.b32.xlu0 %v277, 19
      %v379 = vpop.permute.xlu0 %378
      %380 = vrot.lane.b32.xlu0 %v282, 19
      %v381 = vpop.permute.xlu0 %380
      %382 = vrot.lane.b32.xlu0 %v290, 19
      %v383 = vpop.permute.xlu0 %382
      %384 = vrot.lane.b32.xlu0 %v291, 19
      %v385 = vpop.permute.xlu0 %384
      %386 = vrot.lane.b32.xlu0 %v292, 19
      %v387 = vpop.permute.xlu0 %386
      %388 = vrot.lane.b32.xlu0 %v294, 19
      %v389 = vpop.permute.xlu0 %388
      %390 = vrot.lane.b32.xlu0 %v302, 19
      %v391 = vpop.permute.xlu0 %390
      %392 = vrot.lane.b32.xlu0 %v303, 19
      %v393 = vpop.permute.xlu0 %392
      %394 = vrot.lane.b32.xlu0 %v304, 19
      %v395 = vpop.permute.xlu0 %394
      %396 = vrot.lane.b32.xlu0 %v306, 19
      %v397 = vpop.permute.xlu0 %396
      %398 = vrot.lane.b32.xlu0 %v314, 19
      %v399 = vpop.permute.xlu0 %398
      %400 = vrot.lane.b32.xlu0 %v315, 19
      %v401 = vpop.permute.xlu0 %400
      %402 = vrot.lane.b32.xlu0 %v316, 19
      %v403 = vpop.permute.xlu0 %402
      %404 = vrot.lane.b32.xlu0 %v318, 19
      %v405 = vpop.permute.xlu0 %404
      %406 = vrot.lane.b32.xlu0 %v326, 19
      %v407 = vpop.permute.xlu0 %406
      %408 = vrot.lane.b32.xlu0 %v327, 19
      %v409 = vpop.permute.xlu0 %408
      %410 = vrot.lane.b32.xlu0 %v328, 19
      %v411 = vpop.permute.xlu0 %410
      %vm412 = vcmask 154624
      %v413 = vsel %vm412, %v341, %v343
      %v414 = vsel %vm412, %v343, %v345
      %v415 = vsel %vm412, %v345, %v347
      %v416 = vsel %vm412, %v349, %v351
      %v417 = vsel %vm412, %v351, %v353
      %v418 = vsel %vm412, %v353, %v355
      %v419 = vsel %vm412, %v357, %v359
      %v420 = vsel %vm412, %v359, %v361
      %v421 = vsel %vm412, %v361, %v363
      %v422 = vsel %vm412, %v365, %v367
      %v423 = vsel %vm412, %v367, %v369
      %v424 = vsel %vm412, %v369, %v371
      %v425 = vsel %vm412, %v373, %v375
      %v426 = vsel %vm412, %v375, %v377
      %v427 = vsel %vm412, %v377, %v379
      %v428 = vsel %vm412, %v381, %v383
      %v429 = vsel %vm412, %v383, %v385
      %v430 = vsel %vm412, %v385, %v387
      %v431 = vsel %vm412, %v389, %v391
      %v432 = vsel %vm412, %v391, %v393
      %v433 = vsel %vm412, %v393, %v395
      %v434 = vsel %vm412, %v397, %v399
      %v435 = vsel %vm412, %v399, %v401
      %v436 = vsel %vm412, %v401, %v403
      %v437 = vsel %vm412, %v405, %v407
      %v438 = vsel %vm412, %v407, %v409
      %v439 = vsel %vm412, %v409, %v411
      %vm467 = vcmask 130048
      %v469 = vsel %vm467, %v338, 0
      %471 = vmatpush.bf16.msra.mxu0 %v434
      %472 = vmatpush.bf16.msra.mxu0 %v431
      %473 = vmatpush.bf16.msra.mxu0 %v428
      %474 = vmatpush.bf16.msra.mxu0 %v425
      %475 = vmatpush.bf16.msra.mxu0 %v422
      %476 = vmatpush.bf16.msra.mxu0 %v419
      %477 = vmatpush.bf16.msra.mxu0 %v416
      %478 = vmatpush.bf16.msra.mxu0 %v413
      %479 = vmatmul.bf16.gmra.mxu0 %v337
      %v480 = vpop.f32.mrf.mxu0
      %v481 = vadd.f32 0.0, %v480
      %v482 = vpop.f32.mrf.mxu0
      %v483 = vadd.f32 0.0, %v482
      %484 = vdwg.mxu0
      %485 = vmatpush.bf16.msra.mxu0 0
      %486 = vmatpush.bf16.msra.mxu0 0
      %487 = vmatpush.bf16.msra.mxu0 0
      %488 = vmatpush.bf16.msra.mxu0 0
      %489 = vmatpush.bf16.msra.mxu0 0
      %490 = vmatpush.bf16.msra.mxu0 0
      %491 = vmatpush.bf16.msra.mxu0 0
      %492 = vmatpush.bf16.msra.mxu0 %v437
      %493 = vmatmul.bf16.gmra.mxu0 %v469
      %v494 = vpop.f32.mrf.mxu0
      %v495 = vadd.f32 %v481, %v494
      %v496 = vpop.f32.mrf.mxu0
      %v497 = vadd.f32 %v483, %v496
      %498 = vdwg.mxu0
      %499 = vmatpush.bf16.msra.mxu0 %v435
      %500 = vmatpush.bf16.msra.mxu0 %v432
      %501 = vmatpush.bf16.msra.mxu0 %v429
      %502 = vmatpush.bf16.msra.mxu0 %v426
      %503 = vmatpush.bf16.msra.mxu0 %v423
      %504 = vmatpush.bf16.msra.mxu0 %v420
      %505 = vmatpush.bf16.msra.mxu0 %v417
      %506 = vmatpush.bf16.msra.mxu0 %v414
      %507 = vmatmul.bf16.gmra.mxu0 %v337
      %v508 = vpop.f32.mrf.mxu0
      %v509 = vadd.f32 0.0, %v508
      %v510 = vpop.f32.mrf.mxu0
      %v511 = vadd.f32 0.0, %v510
      %512 = vdwg.mxu0
      %513 = vmatpush.bf16.msra.mxu0 0
      %514 = vmatpush.bf16.msra.mxu0 0
      %515 = vmatpush.bf16.msra.mxu0 0
      %516 = vmatpush.bf16.msra.mxu0 0
      %517 = vmatpush.bf16.msra.mxu0 0
      %518 = vmatpush.bf16.msra.mxu0 0
      %519 = vmatpush.bf16.msra.mxu0 0
      %520 = vmatpush.bf16.msra.mxu0 %v438
      %521 = vmatmul.bf16.gmra.mxu0 %v469
      %v522 = vpop.f32.mrf.mxu0
      %v523 = vadd.f32 %v509, %v522
      %v524 = vpop.f32.mrf.mxu0
      %v525 = vadd.f32 %v511, %v524
      %526 = vdwg.mxu0
      %527 = vmatpush.bf16.msra.mxu0 %v436
      %528 = vmatpush.bf16.msra.mxu0 %v433
      %529 = vmatpush.bf16.msra.mxu0 %v430
      %530 = vmatpush.bf16.msra.mxu0 %v427
      %531 = vmatpush.bf16.msra.mxu0 %v424
      %532 = vmatpush.bf16.msra.mxu0 %v421
      %533 = vmatpush.bf16.msra.mxu0 %v418
      %534 = vmatpush.bf16.msra.mxu0 %v415
      %535 = vmatmul.bf16.gmra.mxu0 %v337
      %v536 = vpop.f32.mrf.mxu0
      %v537 = vadd.f32 0.0, %v536
      %v538 = vpop.f32.mrf.mxu0
      %v539 = vadd.f32 0.0, %v538
      %540 = vdwg.mxu0
      %541 = vmatpush.bf16.msra.mxu0 0
      %542 = vmatpush.bf16.msra.mxu0 0
      %543 = vmatpush.bf16.msra.mxu0 0
      %544 = vmatpush.bf16.msra.mxu0 0
      %545 = vmatpush.bf16.msra.mxu0 0
      %546 = vmatpush.bf16.msra.mxu0 0
      %547 = vmatpush.bf16.msra.mxu0 0
      %548 = vmatpush.bf16.msra.mxu0 %v439
      %549 = vmatmul.bf16.gmra.mxu0 %v469
      %v550 = vpop.f32.mrf.mxu0
      %v551 = vadd.f32 %v537, %v550
      %v552 = vpop.f32.mrf.mxu0
      %v553 = vadd.f32 %v539, %v552
      %554 = vdwg.mxu0
      %v555 = vpack.c.bf16 %v523, %v495
      %v556 = vpack.c.bf16 %v551, %v551
      %v557 = vpack.c.bf16 %v525, %v497
      %v558 = vpack.c.bf16 %v553, %v553
      %559 = vst [vmem:[%s205] sm:$0xff] %v555
      %560 = vst [vmem:[%s205 + $0x8] sm:$0xf] %v556
      %561 = vst [vmem:[%s205 + $0xc] sm:$0xff] %v557
      %562 = vst [vmem:[%s205 + $0x14] sm:$0xf] %v558
      %v563 = vunpack.c.l.bf16 %v555
      %v564 = vunpack.c.h.bf16 %v555
      %v565 = vunpack.c.l.bf16 %v556
      %v566 = vunpack.c.l.bf16 %v557
      %v567 = vunpack.c.h.bf16 %v557
      %v568 = vunpack.c.l.bf16 %v558
      %v569 = vld [vmem:[%s2] sm:$0x7]
      %vm570 = vcmp.gt.f32.partialorder %v569, 0.0
      %v571 = vsel %vm570, 1, 0
      %v572 = vperm.slane %v571, 0
      %v573 = vperm.slane %v571, 1
      %v574 = vperm.slane %v571, 2
      %vm575 = vcmp.eq.s32.totalorder %v572, 1
      %vm576 = vcmp.eq.s32.totalorder %v573, 1
      %vm577 = vcmp.eq.s32.totalorder %v574, 1
      %v578 = vsel %vm575, %v563, 0.0
      %v579 = vsel %vm576, %v564, 0.0
      %v580 = vsel %vm577, %v565, 0.0
      %v581 = vsel %vm575, %v566, 0.0
      %v582 = vsel %vm576, %v567, 0.0
      %v583 = vsel %vm577, %v568, 0.0
      %v584 = vadd.f32 %v578, %v579
      %v585 = vadd.f32 %v584, %v580
      %586 = vadd.xlane.f32.xlu0 %v585
      %v587 = vpop.xlane.xlu0 %586
      %v588 = vadd.f32 %v581, %v582
      %v589 = vadd.f32 %v588, %v583
      %590 = vadd.xlane.f32.xlu0 %v589
      %v591 = vpop.xlane.xlu0 %590
      %vm592 = vcmask 7168
      %593 = vst.msk [vmem:[%s210] sm:$0xff] %vm592, %v587
      %594 = vst.msk [vmem:[%s210 + $0x8] sm:$0xff] %vm592, %v591
      %v595 = vmul.f32 %v578, %v578
      %v596 = vmul.f32 %v579, %v579
      %v597 = vmul.f32 %v580, %v580
      %v598 = vmul.f32 %v581, %v581
      %v599 = vmul.f32 %v582, %v582
      %v600 = vmul.f32 %v583, %v583
      %v601 = vadd.f32 %v595, %v596
      %v602 = vadd.f32 %v601, %v597
      %603 = vadd.xlane.f32.xlu0 %v602
      %v604 = vpop.xlane.xlu0 %603
      %v605 = vadd.f32 %v598, %v599
      %v606 = vadd.f32 %v605, %v600
      %607 = vadd.xlane.f32.xlu0 %v606
      %v608 = vpop.xlane.xlu0 %607
      %vm609 = vcmask 15368
      %610 = vst.msk [vmem:[%s210] sm:$0xff] %vm609, %v604
      %611 = vst.msk [vmem:[%s210 + $0x8] sm:$0xff] %vm609, %v608
      %p612 = scmp.lt.s32.totalorder %s16, 1
      %s613 = scalar_select %p612, %s16, 1
      %s614 = smul.addr %s613, 6
      %s615 = smul.addr %s614, 4
      %s616 = scalar_lea.vmem %s3, %s615
      %p617 = scmp.lt.s32.totalorder %s16, 1
      %s618 = scalar_select %p617, %s16, 1
      %s619 = smul.addr %s618, 2
      %s620 = smul.addr %s619, 8
      %s621 = scalar_lea.vmem %s4, %s620
      // Predicated region
      $region33: #{residual_block_forward.3} parent=31 // pred_check
        %p622 = pneg %p102
      $region34: #{residual_block_forward.3} parent=31 // pred_check_branch
        %624 = sbr.rel (%p622) target = $region36
      $region35: #{residual_block_forward.3} parent=31 // pred_region
        _
      $region36: #{residual_block_forward.3} parent=31 // pred_fallthru
        _
      // Predicated region
      $region37: #{residual_block_forward.3} parent=31 // pred_check
        %p625 = pneg %p128
      $region38: #{residual_block_forward.3} parent=31 // pred_check_branch
        %627 = sbr.rel (%p625) target = $region40
      $region39: #{residual_block_forward.3} parent=31 // pred_region
        _
      $region40: #{residual_block_forward.3} parent=31 // pred_fallthru
        _
    $region32: #{residual_block_forward.3} parent=5 // pred_fallthru
      _
    %p628 = scmp.le.s32.totalorder 2, %s11
    // Predicated region
    $region41: #{residual_block_forward.3} parent=5 // pred_check
      %p629 = pneg %p628
    $region42: #{residual_block_forward.3} parent=5 // pred_check_branch
      %631 = sbr.rel (%p629) target = $region44
    $region43: #{residual_block_forward.3} parent=5 // pred_region
      %s632 = ssub.s32 %s11, 2
      // Predicated region
      $region45: #{residual_block_forward.3} parent=43 // pred_check
        %p633 = pneg %p108
      $region46: #{residual_block_forward.3} parent=43 // pred_check_branch
        %635 = sbr.rel (%p633) target = $region48
      $region47: #{residual_block_forward.3} parent=43 // pred_region
        %p636 = scmp.lt.s32.totalorder %s17, 1
        %s637 = scalar_select %p636, %s17, 1
        %s638 = smul.addr %s637, 6
        %s639 = smul.addr %s638, 4
        %s640 = scalar_lea.vmem %s3, %s639
      $region48: #{residual_block_forward.3} parent=43 // pred_fallthru
        _
      // Predicated region
      $region49: #{residual_block_forward.3} parent=43 // pred_check
        %p641 = pneg %p134
      $region50: #{residual_block_forward.3} parent=43 // pred_check_branch
        %643 = sbr.rel (%p641) target = $region52
      $region51: #{residual_block_forward.3} parent=43 // pred_region
        %p644 = scmp.lt.s32.totalorder %s17, 1
        %s645 = scalar_select %p644, %s17, 1
        %s646 = smul.addr %s645, 2
        %s647 = smul.addr %s646, 8
        %s648 = scalar_lea.vmem %s4, %s647
      $region52: #{residual_block_forward.3} parent=43 // pred_fallthru
        _
    $region44: #{residual_block_forward.3} parent=5 // pred_fallthru
      _
  $region6: #{residual_block_forward.3} parent=0 // loop_footer
    %s15 = sadd.s32 1, %s11
  $region7: #{residual_block_forward.3} parent=0 // loop_footer_branch
    %10 = sbr.rel target = $region3
  $region8: #{residual_block_forward.3} parent=0 // loop_exit
    _

// kernel: residual_block_forward.4
$region0: #{residual_block_forward.4}
  #allocation0 [shape = 'u32[]', space=smem, size = 0x4, offset = 0x4, fixed_abs, tag = 'smem constant byte address 0x4 - core index']
  #allocation1 [shape = 'u32[72,128]{1,0:T(1,128)}', space=vmem, size = 0x9000, scoped, tag = 'internal scratch']
  %s0 = inlined_call_operand.vmem [shape: bf16[2,16,384], index: 0, kind: input, shape index: {}]
  %s1 = inlined_call_operand.vmem [shape: bf16[16,144], index: 1, kind: input, shape index: {}]
  %s2 = inlined_call_operand.vmem [shape: f32[16,1], index: 2, kind: input, shape index: {}]
  %s3 = inlined_call_operand.vmem [shape: f32[16,1], index: 3, kind: input, shape index: {}]
  %s4 = inlined_call_operand.vmem [shape: f32[1,384], index: 4, kind: input, shape index: {}]
  %s5 = inlined_call_operand.vmem [shape: bf16[2,16,384], index: 5, kind: output, shape index: {0}]
  %s6 = inlined_call_operand.vmem [shape: f32[2,16,2], index: 6, kind: output, shape index: {1}]
  %7 = xla_tuple %s5, %s6
  %s8 = sld [smem:[#allocation0]]
  $region61: #{residual_block_forward.4} parent=0
    _
  %s10 = ssub.s32 1, %s8
  %s11 = scalar_select 0, %s10, %s8
  loop: start=0, step=1, limit=4
  $region2: #{residual_block_forward.4} parent=0 // loop_pre_header
    _
  $region3: #{residual_block_forward.4} parent=0 // loop_header
    %s13 = sphi 0, %s17
    %p14 = scmp.ge.s32.totalorder %s13, 4
    %s23 = sphi 0, %s25
    %s26 = sphi 0, %s23
    %s27 = sphi 0, %s26
    %s43 = sphi 0, %s27
    %s47 = sphi 0, %s47
    %s49 = sphi 0, %s47
    %s50 = sphi 0, %s49
    %s64 = sphi 0, %s50
    %s68 = sphi 0, %s68
    %s70 = sphi 0, %s68
    %s71 = sphi 0, %s70
    %s85 = sphi 0, %s71
    %s89 = sphi 0, %s89
    %s91 = sphi 0, %s89
    %s92 = sphi 0, %s91
    %s106 = sphi 0, %s92
    %s110 = sphi 0, %s110
    %s112 = sphi 0, %s110
    %s113 = sphi 0, %s112
    %s127 = sphi 0, %s113
    %s133 = sphi 0, %s135
    %s136 = sphi 0, %s133
    %s137 = sphi 0, %s136
    %s153 = sphi 0, %s137
    %s159 = sphi 0, %s161
    %s162 = sphi 0, %s159
    %s163 = sphi 0, %s162
    %s179 = sphi 0, %s163
  $region4: #{residual_block_forward.4} parent=0 // loop_header_branch
    %16 = sbr.rel (%p14) target = $region8
  $region5: #{residual_block_forward.4} parent=0 // loop_body
    %s18 = ssub.s32 %s13, 1
    %s19 = ssub.s32 %s13, 2
    %s20 = sadd.s32 %s13, 1
    %s21 = ssub.s32 %s13, %s20
    %p22 = scmp.eq.s32.totalorder %s21, 0
    %s24 = sadd.s32 %s23, 1
    %s25 = scalar_select %p22, %s23, %s24
    %p28 = pneg %p22
    %p29 = scmp.eq.s32.totalorder %s13, 1
    %p30 = por %p28, %p29
    %p31 = scmp.ne.s32.totalorder %s23, %s26
    %p32 = scmp.eq.s32.totalorder %s13, 0
    %p33 = por %p31, %p32
    %p34 = scmp.ne.s32.totalorder %s23, %s26
    %p35 = scmp.eq.s32.totalorder %s18, 1
    %p36 = por %p34, %p35
    %p37 = scmp.ne.s32.totalorder %s26, %s27
    %p38 = scmp.eq.s32.totalorder %s18, 0
    %p39 = por %p37, %p38
    %p40 = scmp.ne.s32.totalorder %s26, %s27
    %p41 = scmp.eq.s32.totalorder %s19, 1
    %p42 = por %p40, %p41
    %p44 = scmp.ne.s32.totalorder %s27, %s43
    %p45 = scmp.eq.s32.totalorder %s19, 0
    %p46 = por %p44, %p45
    %s48 = sadd.s32 %s47, 1
    %p51 = scmp.eq.s32.totalorder %s13, 1
    %p52 = scmp.ne.s32.totalorder %s47, %s49
    %p53 = scmp.eq.s32.totalorder %s13, 0
    %p54 = por %p52, %p53
    %p55 = scmp.ne.s32.totalorder %s47, %s49
    %p56 = scmp.eq.s32.totalorder %s18, 1
    %p57 = por %p55, %p56
    %p58 = scmp.ne.s32.totalorder %s49, %s50
    %p59 = scmp.eq.s32.totalorder %s18, 0
    %p60 = por %p58, %p59
    %p61 = scmp.ne.s32.totalorder %s49, %s50
    %p62 = scmp.eq.s32.totalorder %s19, 1
    %p63 = por %p61, %p62
    %p65 = scmp.ne.s32.totalorder %s50, %s64
    %p66 = scmp.eq.s32.totalorder %s19, 0
    %p67 = por %p65, %p66
    %s69 = sadd.s32 %s68, 1
    %p72 = scmp.eq.s32.totalorder %s13, 1
    %p73 = scmp.ne.s32.totalorder %s68, %s70
    %p74 = scmp.eq.s32.totalorder %s13, 0
    %p75 = por %p73, %p74
    %p76 = scmp.ne.s32.totalorder %s68, %s70
    %p77 = scmp.eq.s32.totalorder %s18, 1
    %p78 = por %p76, %p77
    %p79 = scmp.ne.s32.totalorder %s70, %s71
    %p80 = scmp.eq.s32.totalorder %s18, 0
    %p81 = por %p79, %p80
    %p82 = scmp.ne.s32.totalorder %s70, %s71
    %p83 = scmp.eq.s32.totalorder %s19, 1
    %p84 = por %p82, %p83
    %p86 = scmp.ne.s32.totalorder %s71, %s85
    %p87 = scmp.eq.s32.totalorder %s19, 0
    %p88 = por %p86, %p87
    %s90 = sadd.s32 %s89, 1
    %p93 = scmp.eq.s32.totalorder %s13, 1
    %p94 = scmp.ne.s32.totalorder %s89, %s91
    %p95 = scmp.eq.s32.totalorder %s13, 0
    %p96 = por %p94, %p95
    %p97 = scmp.ne.s32.totalorder %s89, %s91
    %p98 = scmp.eq.s32.totalorder %s18, 1
    %p99 = por %p97, %p98
    %p100 = scmp.ne.s32.totalorder %s91, %s92
    %p101 = scmp.eq.s32.totalorder %s18, 0
    %p102 = por %p100, %p101
    %p103 = scmp.ne.s32.totalorder %s91, %s92
    %p104 = scmp.eq.s32.totalorder %s19, 1
    %p105 = por %p103, %p104
    %p107 = scmp.ne.s32.totalorder %s92, %s106
    %p108 = scmp.eq.s32.totalorder %s19, 0
    %p109 = por %p107, %p108
    %s111 = sadd.s32 %s110, 1
    %p114 = scmp.eq.s32.totalorder %s13, 1
    %p115 = scmp.ne.s32.totalorder %s110, %s112
    %p116 = scmp.eq.s32.totalorder %s13, 0
    %p117 = por %p115, %p116
    %p118 = scmp.ne.s32.totalorder %s110, %s112
    %p119 = scmp.eq.s32.totalorder %s18, 1
    %p120 = por %p118, %p119
    %p121 = scmp.ne.s32.totalorder %s112, %s113
    %p122 = scmp.eq.s32.totalorder %s18, 0
    %p123 = por %p121, %p122
    %p124 = scmp.ne.s32.totalorder %s112, %s113
    %p125 = scmp.eq.s32.totalorder %s19, 1
    %p126 = por %p124, %p125
    %p128 = scmp.ne.s32.totalorder %s113, %s127
    %p129 = scmp.eq.s32.totalorder %s19, 0
    %p130 = por %p128, %p129
    %s131 = ssub.s32 %s13, %s20
    %p132 = scmp.eq.s32.totalorder %s131, 0
    %s134 = sadd.s32 %s133, 1
    %s135 = scalar_select %p132, %s133, %s134
    %p138 = pneg %p132
    %p139 = scmp.eq.s32.totalorder %s13, 1
    %p140 = por %p138, %p139
    %p141 = scmp.ne.s32.totalorder %s133, %s136
    %p142 = scmp.eq.s32.totalorder %s13, 0
    %p143 = por %p141, %p142
    %p144 = scmp.ne.s32.totalorder %s133, %s136
    %p145 = scmp.eq.s32.totalorder %s18, 1
    %p146 = por %p144, %p145
    %p147 = scmp.ne.s32.totalorder %s136, %s137
    %p148 = scmp.eq.s32.totalorder %s18, 0
    %p149 = por %p147, %p148
    %p150 = scmp.ne.s32.totalorder %s136, %s137
    %p151 = scmp.eq.s32.totalorder %s19, 1
    %p152 = por %p150, %p151
    %p154 = scmp.ne.s32.totalorder %s137, %s153
    %p155 = scmp.eq.s32.totalorder %s19, 0
    %p156 = por %p154, %p155
    %s157 = ssub.s32 %s13, %s20
    %p158 = scmp.eq.s32.totalorder %s157, 0
    %s160 = sadd.s32 %s159, 1
    %s161 = scalar_select %p158, %s159, %s160
    %p164 = pneg %p158
    %p165 = scmp.eq.s32.totalorder %s13, 1
    %p166 = por %p164, %p165
    %p167 = scmp.ne.s32.totalorder %s159, %s162
    %p168 = scmp.eq.s32.totalorder %s13, 0
    %p169 = por %p167, %p168
    %p170 = scmp.ne.s32.totalorder %s159, %s162
    %p171 = scmp.eq.s32.totalorder %s18, 1
    %p172 = por %p170, %p171
    %p173 = scmp.ne.s32.totalorder %s162, %s163
    %p174 = scmp.eq.s32.totalorder %s18, 0
    %p175 = por %p173, %p174
    %p176 = scmp.ne.s32.totalorder %s162, %s163
    %p177 = scmp.eq.s32.totalorder %s19, 1
    %p178 = por %p176, %p177
    %p180 = scmp.ne.s32.totalorder %s163, %s179
    %p181 = scmp.eq.s32.totalorder %s19, 0
    %p182 = por %p180, %p181
    %p183 = scmp.le.s32.totalorder 1, %s13
    %p184 = scmp.lt.s32.totalorder %s13, 3
    %p185 = pnand %p183, %p184
    %p186 = pneg %p185
    // Predicated region
    $region9: #{residual_block_forward.4} parent=5 // pred_check
      _
    $region10: #{residual_block_forward.4} parent=5 // pred_check_branch
      %188 = sbr.rel (%p185) target = $region12
    $region11: #{residual_block_forward.4} parent=5 // pred_region
      %s189 = ssub.s32 %s13, 1
      // Predicated region
      $region13: #{residual_block_forward.4} parent=11 // pred_check
        %p190 = pneg %p60
      $region14: #{residual_block_forward.4} parent=11 // pred_check_branch
        %192 = sbr.rel (%p190) target = $region16
      $region15: #{residual_block_forward.4} parent=11 // pred_region
        _
      $region16: #{residual_block_forward.4} parent=11 // pred_fallthru
        _
      // Predicated region
      $region17: #{residual_block_forward.4} parent=11 // pred_check
        %p193 = pneg %p81
      $region18: #{residual_block_forward.4} parent=11 // pred_check_branch
        %195 = sbr.rel (%p193) target = $region20
      $region19: #{residual_block_forward.4} parent=11 // pred_region
        _
      $region20: #{residual_block_forward.4} parent=11 // pred_fallthru
        _
      // Predicated region
      $region21: #{residual_block_forward.4} parent=11 // pred_check
        %p196 = pneg %p102
      $region22: #{residual_block_forward.4} parent=11 // pred_check_branch
        %198 = sbr.rel (%p196) target = $region24
      $region23: #{residual_block_forward.4} parent=11 // pred_region
        _
      $region24: #{residual_block_forward.4} parent=11 // pred_fallthru
        _
      // Predicated region
      $region25: #{residual_block_forward.4} parent=11 // pred_check
        %p199 = pneg %p123
      $region26: #{residual_block_forward.4} parent=11 // pred_check_branch
        %201 = sbr.rel (%p199) target = $region28
      $region27: #{residual_block_forward.4} parent=11 // pred_region
        _
      $region28: #{residual_block_forward.4} parent=11 // pred_fallthru
        _
    $region12: #{residual_block_forward.4} parent=5 // pred_fallthru
      _
    %p202 = scmp.lt.s32.totalorder %s13, 2
    // Predicated region
    $region29: #{residual_block_forward.4} parent=5 // pred_check
      %p203 = pneg %p202
    $region30: #{residual_block_forward.4} parent=5 // pred_check_branch
      %205 = sbr.rel (%p203) target = $region32
    $region31: #{residual_block_forward.4} parent=5 // pred_region
      // Predicated region
      $region33: #{residual_block_forward.4} parent=31 // pred_check
        %p206 = pneg %p33
      $region34: #{residual_block_forward.4} parent=31 // pred_check_branch
        %208 = sbr.rel (%p206) target = $region36
      $region35: #{residual_block_forward.4} parent=31 // pred_region
        %p209 = scmp.lt.s32.totalorder %s13, 1
        %s210 = scalar_select %p209, %s13, 1
        %s211 = smul.addr %s210, 6
        %s212 = smul.addr %s211, 4
        %s213 = scalar_lea.vmem %s0, %s212
      $region36: #{residual_block_forward.4} parent=31 // pred_fallthru
        _
    $region32: #{residual_block_forward.4} parent=5 // pred_fallthru
      _
    %p214 = scmp.le.s32.totalorder 1, %s13
    %p215 = scmp.lt.s32.totalorder %s13, 3
    %p216 = pnand %p214, %p215
    %p217 = pneg %p216
    // Predicated region
    $region37: #{residual_block_forward.4} parent=5 // pred_check
      _
    $region38: #{residual_block_forward.4} parent=5 // pred_check_branch
      %219 = sbr.rel (%p216) target = $region40
    $region39: #{residual_block_forward.4} parent=5 // pred_region
      %s220 = ssub.s32 %s13, 1
      %p221 = scmp.lt.s32.totalorder %s18, 1
      %s222 = scalar_select %p221, %s18, 1
      %s223 = smul.addr %s222, 6
      %s224 = smul.addr %s223, 4
      %s225 = scalar_lea.vmem %s0, %s224
      %p226 = pneg %p39
      %p227 = pneg %p36
      %p228 = pneg %p60
      %p229 = pneg %p57
      %p230 = pneg %p81
      %p231 = pneg %p78
      %p232 = pneg %p102
      %p233 = pneg %p99
      %p234 = pneg %p123
      %p235 = pneg %p120
      %p236 = pneg %p149
      %p237 = pneg %p146
      %p238 = scmp.lt.s32.totalorder %s18, 1
      %s239 = scalar_select %p238, %s18, 1
      %s240 = smul.addr %s239, 6
      %s241 = smul.addr %s240, 4
      %s242 = scalar_lea.vmem %s5, %s241
      %p243 = pneg %p175
      %p244 = pneg %p172
      %p245 = scmp.lt.s32.totalorder %s18, 1
      %s246 = scalar_select %p245, %s18, 1
      %s247 = smul.addr %s246, 2
      %s248 = smul.addr %s247, 8
      %s249 = scalar_lea.vmem %s6, %s248
      %p250 = scmp.lt.s32.totalorder %s18, 1
      %s251 = scalar_select %p250, %s18, 1
      %s252 = smul.addr %s251, 6
      %s253 = smul.addr %s252, 4
      %s254 = scalar_lea.vmem %s0, %s253
      %p255 = scmp.lt.s32.totalorder %s18, 1
      %s256 = scalar_select %p255, %s18, 1
      %s257 = smul.addr %s256, 6
      %s258 = smul.addr %s257, 4
      %s259 = scalar_lea.vmem %s5, %s258
      %p260 = scmp.lt.s32.totalorder %s18, 1
      %s261 = scalar_select %p260, %s18, 1
      %s262 = smul.addr %s261, 2
      %s263 = smul.addr %s262, 8
      %s264 = scalar_lea.vmem %s6, %s263
      %v266 = vld [vmem:[%s4] sm:$0x7]
      %v267 = vld [vmem:[%s254] sm:$0xff]
      %v268 = vld [vmem:[%s254 + $0x8] sm:$0xf]
      %v269 = vld [vmem:[%s254 + $0xc] sm:$0xff]
      %v270 = vld [vmem:[%s254 + $0x14] sm:$0xf]
      %v271 = vunpack.c.l.bf16 %v267
      %v272 = vunpack.c.h.bf16 %v267
      %v273 = vunpack.c.l.bf16 %v268
      %v274 = vunpack.c.l.bf16 %v269
      %v275 = vunpack.c.h.bf16 %v269
      %v276 = vunpack.c.l.bf16 %v270
      %v277 = vld [vmem:[%s2] sm:$0xff]
      %v278 = vld [vmem:[%s2 + $0x8] sm:$0xff]
      %280 = vset.pattern.permute.xlu0 0
      %281 = vperm.xlu0 %280, %v277
      %v282 = vpop.permute.xlu0 %281
      %285 = vset.pattern.permute.xlu0 0
      %286 = vperm.xlu0 %285, %v278
      %v287 = vpop.permute.xlu0 %286
      %v289 = vmul.f32 %v271, %v282
      %v290 = vmul.f32 %v272, %v282
      %v291 = vmul.f32 %v273, %v282
      %v292 = vmul.f32 %v274, %v287
      %v293 = vmul.f32 %v275, %v287
      %v294 = vmul.f32 %v276, %v287
      %v295 = vld [vmem:[%s3] sm:$0xff]
      %v296 = vld [vmem:[%s3 + $0x8] sm:$0xff]
      %298 = vset.pattern.permute.xlu0 0
      %299 = vperm.xlu0 %298, %v295
      %v300 = vpop.permute.xlu0 %299
      %303 = vset.pattern.permute.xlu0 0
      %304 = vperm.xlu0 %303, %v296
      %v305 = vpop.permute.xlu0 %304
      %v307 = vadd.f32 %v289, %v300
      %v308 = vadd.f32 %v290, %v300
      %v309 = vadd.f32 %v291, %v300
      %v310 = vadd.f32 %v292, %v305
      %v311 = vadd.f32 %v293, %v305
      %v312 = vadd.f32 %v294, %v305
      %v313 = vmax.f32 %v307, 0.0
      %v314 = vmax.f32 %v308, 0.0
      %v315 = vmax.f32 %v309, 0.0
      %v316 = vmax.f32 %v310, 0.0
      %v317 = vmax.f32 %v311, 0.0
      %v318 = vmax.f32 %v312, 0.0
      %vm319 = vcmp.gt.f32.partialorder %v266, 0.0
      %v320 = vsel %vm319, 1, 0
      %v321 = vperm.slane %v320, 0
      %v322 = vperm.slane %v320, 1
      %v323 = vperm.slane %v320, 2
      %vm324 = vcmp.eq.s32.totalorder %v321, 1
      %vm325 = vcmp.eq.s32.totalorder %v322, 1
      %vm326 = vcmp.eq.s32.totalorder %v323, 1
      %v327 = vsel %vm324, %v313, 0.0
      %v328 = vsel %vm325, %v314, 0.0
      %v329 = vsel %vm326, %v315, 0.0
      %v330 = vsel %vm324, %v316, 0.0
      %v331 = vsel %vm325, %v317, 0.0
      %v332 = vsel %vm326, %v318, 0.0
      %v333 = vpack.c.bf16 %v328, %v327
      %v334 = vpack.c.bf16 %v329, %v329
      %v335 = vpack.c.bf16 %v331, %v330
      %v336 = vpack.c.bf16 %v332, %v332
      %v341 = vunpack.c.l.b16 %v333
      %v342 = vunpack.c.h.b16 %v333
      %v343 = vunpack.c.l.b16 %v334
      %v344 = vunpack.c.l.b16 %v335
      %v345 = vunpack.c.h.b16 %v335
      %v346 = vunpack.c.l.b16 %v336
      %v347 = vpack.c.b16 %v344, %v341
      %v348 = vpack.c.b16 %v345, %v342
      %v349 = vpack.c.b16 %v346, %v343
      %351 = vrot.lane.b32.xlu0 0, 127
      %v352 = vpop.permute.xlu0 %351
      %353 = vrot.lane.b32.xlu0 %v347, 127
      %v354 = vpop.permute.xlu0 %353
      %355 = vrot.lane.b32.xlu0 %v348, 127
      %v356 = vpop.permute.xlu0 %355
      %357 = vrot.lane.b32.xlu0 %v349, 127
      %v358 = vpop.permute.xlu0 %357
      %vm359 = vcmask 1039360
      %v360 = vsel %vm359, %v352, %v354
      %v361 = vsel %vm359, %v354, %v356
      %v362 = vsel %vm359, %v356, %v358
      %363 = vrot.lane.b32.xlu0 0, 126
      %v364 = vpop.permute.xlu0 %363
      %365 = vrot.lane.b32.xlu0 %v347, 126
      %v366 = vpop.permute.xlu0 %365
      %367 = vrot.lane.b32.xlu0 %v348, 126
      %v368 = vpop.permute.xlu0 %367
      %369 = vrot.lane.b32.xlu0 %v349, 126
      %v370 = vpop.permute.xlu0 %369
      %vm371 = vcmask 1031168
      %v372 = vsel %vm371, %v364, %v366
      %v373 = vsel %vm371, %v366, %v368
      %v374 = vsel %vm371, %v368, %v370
      %375 = vrot.lane.b32.xlu0 0, 110
      %v376 = vpop.permute.xlu0 %375
      %377 = vrot.lane.b32.xlu0 %v347, 110
      %v378 = vpop.permute.xlu0 %377
      %379 = vrot.lane.b32.xlu0 %v348, 110
      %v380 = vpop.permute.xlu0 %379
      %381 = vrot.lane.b32.xlu0 %v349, 110
      %v382 = vpop.permute.xlu0 %381
      %vm383 = vcmask 900096
      %v384 = vsel %vm383, %v376, %v378
      %v385 = vsel %vm383, %v378, %v380
      %v386 = vsel %vm383, %v380, %v382
      %387 = vrot.lane.b32.xlu0 %v347, 109
      %v388 = vpop.permute.xlu0 %387
      %389 = vrot.lane.b32.xlu0 %v348, 109
      %v390 = vpop.permute.xlu0 %389
      %391 = vrot.lane.b32.xlu0 %v349, 109
      %v392 = vpop.permute.xlu0 %391
      %vm393 = vcmask 891904
      %v394 = vsel %vm393, %v388, %v390
      %v395 = vsel %vm393, %v390, %v392
      %396 = vrot.lane.b32.xlu0 %v347, 108
      %v397 = vpop.permute.xlu0 %396
      %398 = vrot.lane.b32.xlu0 %v348, 108
      %v399 = vpop.permute.xlu0 %398
      %400 = vrot.lane.b32.xlu0 %v349, 108
      %v401 = vpop.permute.xlu0 %400
      %402 = vrot.lane.b32.xlu0 0, 108
      %v403 = vpop.permute.xlu0 %402
      %vm404 = vcmask 883712
      %v405 = vsel %vm404, %v397, %v399
      %v406 = vsel %vm404, %v399, %v401
      %v407 = vsel %vm404, %v401, %v403
      %408 = vrot.lane.b32.xlu0 %v347, 92
      %v409 = vpop.permute.xlu0 %408
      %410 = vrot.lane.b32.xlu0 %v348, 92
      %v411 = vpop.permute.xlu0 %410
      %412 = vrot.lane.b32.xlu0 %v349, 92
      %v413 = vpop.permute.xlu0 %412
      %414 = vrot.lane.b32.xlu0 0, 92
      %v415 = vpop.permute.xlu0 %414
      %vm416 = vcmask 752640
      %v417 = vsel %vm416, %v409, %v411
      %v418 = vsel %vm416, %v411, %v413
      %v419 = vsel %vm416, %v413, %v415
      %420 = vrot.lane.b32.xlu0 %v347, 91
      %v421 = vpop.permute.xlu0 %420
      %422 = vrot.lane.b32.xlu0 %v348, 91
      %v423 = vpop.permute.xlu0 %422
      %424 = vrot.lane.b32.xlu0 %v349, 91
      %v425 = vpop.permute.xlu0 %424
      %426 = vrot.lane.b32.xlu0 0, 91
      %v427 = vpop.permute.xlu0 %426
      %vm428 = vcmask 744448
      %v429 = vsel %vm428, %v421, %v423
      %v430 = vsel %vm428, %v423, %v425
      %v431 = vsel %vm428, %v425, %v427
      %432 = vrot.lane.b32.xlu0 %v347, 90
      %v433 = vpop.permute.xlu0 %432
      %434 = vrot.lane.b32.xlu0 %v348, 90
      %v435 = vpop.permute.xlu0 %434
      %436 = vrot.lane.b32.xlu0 %v349, 90
      %v437 = vpop.permute.xlu0 %436
      %438 = vrot.lane.b32.xlu0 0, 90
      %v439 = vpop.permute.xlu0 %438
      %vm440 = vcmask 736256
      %v441 = vsel %vm440, %v433, %v435
      %v442 = vsel %vm440, %v435, %v437
      %v443 = vsel %vm440, %v437, %v439
      %v444 = vld [vmem:[%s1] sm:$0xff]
      %v445 = vld [vmem:[%s1 + $0x8] sm:$0xff]
      %v448 = vunpack.c.l.b16 %v444
      %v449 = vunpack.c.h.b16 %v444
      %v450 = vunpack.c.l.b16 %v445
      %v451 = vunpack.c.h.b16 %v445
      %v452 = vpack.c.b16 %v450, %v448
      %v453 = vpack.c.b16 %v451, %v449
      %455 = vrot.lane.b32.xlu0 0, 19
      %v456 = vpop.permute.xlu0 %455
      %457 = vrot.lane.b32.xlu0 %v347, 19
      %v458 = vpop.permute.xlu0 %457
      %459 = vrot.lane.b32.xlu0 %v348, 19
      %v460 = vpop.permute.xlu0 %459
      %461 = vrot.lane.b32.xlu0 %v349, 19
      %v462 = vpop.permute.xlu0 %461
      %463 = vrot.lane.b32.xlu0 %v360, 19
      %v464 = vpop.permute.xlu0 %463
      %465 = vrot.lane.b32.xlu0 %v361, 19
      %v466 = vpop.permute.xlu0 %465
      %467 = vrot.lane.b32.xlu0 %v362, 19
      %v468 = vpop.permute.xlu0 %467
      %469 = vrot.lane.b32.xlu0 %v358, 19
      %v470 = vpop.permute.xlu0 %469
      %471 = vrot.lane.b32.xlu0 %v372, 19
      %v472 = vpop.permute.xlu0 %471
      %473 = vrot.lane.b32.xlu0 %v373, 19
      %v474 = vpop.permute.xlu0 %473
      %475 = vrot.lane.b32.xlu0 %v374, 19
      %v476 = vpop.permute.xlu0 %475
      %477 = vrot.lane.b32.xlu0 %v370, 19
      %v478 = vpop.permute.xlu0 %477
      %479 = vrot.lane.b32.xlu0 %v384, 19
      %v480 = vpop.permute.xlu0 %479
      %481 = vrot.lane.b32.xlu0 %v385, 19
      %v482 = vpop.permute.xlu0 %481
      %483 = vrot.lane.b32.xlu0 %v386, 19
      %v484 = vpop.permute.xlu0 %483
      %485 = vrot.lane.b32.xlu0 %v382, 19
      %v486 = vpop.permute.xlu0 %485
      %487 = vrot.lane.b32.xlu0 %v388, 19
      %v488 = vpop.permute.xlu0 %487
      %489 = vrot.lane.b32.xlu0 %v394, 19
      %v490 = vpop.permute.xlu0 %489
      %491 = vrot.lane.b32.xlu0 %v395, 19
      %v492 = vpop.permute.xlu0 %491
      %493 = vrot.lane.b32.xlu0 %v392, 19
      %v494 = vpop.permute.xlu0 %493
      %495 = vrot.lane.b32.xlu0 %v397, 19
      %v496 = vpop.permute.xlu0 %495
      %497 = vrot.lane.b32.xlu0 %v405, 19
      %v498 = vpop.permute.xlu0 %497
      %499 = vrot.lane.b32.xlu0 %v406, 19
      %v500 = vpop.permute.xlu0 %499
      %501 = vrot.lane.b32.xlu0 %v407, 19
      %v502 = vpop.permute.xlu0 %501
      %503 = vrot.lane.b32.xlu0 %v409, 19
      %v504 = vpop.permute.xlu0 %503
      %505 = vrot.lane.b32.xlu0 %v417, 19
      %v506 = vpop.permute.xlu0 %505
      %507 = vrot.lane.b32.xlu0 %v418, 19
      %v508 = vpop.permute.xlu0 %507
      %509 = vrot.lane.b32.xlu0 %v419, 19
      %v510 = vpop.permute.xlu0 %509
      %511 = vrot.lane.b32.xlu0 %v421, 19
      %v512 = vpop.permute.xlu0 %511
      %513 = vrot.lane.b32.xlu0 %v429, 19
      %v514 = vpop.permute.xlu0 %513
      %515 = vrot.lane.b32.xlu0 %v430, 19
      %v516 = vpop.permute.xlu0 %515
      %517 = vrot.lane.b32.xlu0 %v431, 19
      %v518 = vpop.permute.xlu0 %517
      %519 = vrot.lane.b32.xlu0 %v433, 19
      %v520 = vpop.permute.xlu0 %519
      %521 = vrot.lane.b32.xlu0 %v441, 19
      %v522 = vpop.permute.xlu0 %521
      %523 = vrot.lane.b32.xlu0 %v442, 19
      %v524 = vpop.permute.xlu0 %523
      %525 = vrot.lane.b32.xlu0 %v443, 19
      %v526 = vpop.permute.xlu0 %525
      %vm527 = vcmask 154624
      %v528 = vsel %vm527, %v456, %v458
      %v529 = vsel %vm527, %v458, %v460
      %v530 = vsel %vm527, %v460, %v462
      %v531 = vsel %vm527, %v464, %v466
      %v532 = vsel %vm527, %v466, %v468
      %v533 = vsel %vm527, %v468, %v470
      %v534 = vsel %vm527, %v472, %v474
      %v535 = vsel %vm527, %v474, %v476
      %v536 = vsel %vm527, %v476, %v478
      %v537 = vsel %vm527, %v480, %v482
      %v538 = vsel %vm527, %v482, %v484
      %v539 = vsel %vm527, %v484, %v486
      %v540 = vsel %vm527, %v488, %v490
      %v541 = vsel %vm527, %v490, %v492
      %v542 = vsel %vm527, %v492, %v494
      %v543 = vsel %vm527, %v496, %v498
      %v544 = vsel %vm527, %v498, %v500
      %v545 = vsel %vm527, %v500, %v502
      %v546 = vsel %vm527, %v504, %v506
      %v547 = vsel %vm527, %v506, %v508
      %v548 = vsel %vm527, %v508, %v510
      %v549 = vsel %vm527, %v512, %v514
      %v550 = vsel %vm527, %v514, %v516
      %v551 = vsel %vm527, %v516, %v518
      %v552 = vsel %vm527, %v520, %v522
      %v553 = vsel %vm527, %v522, %v524
      %v554 = vsel %vm527, %v524, %v526
      %vm582 = vcmask 130048
      %v584 = vsel %vm582, %v453, 0
      %586 = vmatpush.bf16.msra.mxu0 %v549
      %587 = vmatpush.bf16.msra.mxu0 %v546
      %588 = vmatpush.bf16.msra.mxu0 %v543
      %589 = vmatpush.bf16.msra.mxu0 %v540
      %590 = vmatpush.bf16.msra.mxu0 %v537
      %591 = vmatpush.bf16.msra.mxu0 %v534
      %592 = vmatpush.bf16.msra.mxu0 %v531
      %593 = vmatpush.bf16.msra.mxu0 %v528
      %594 = vmatmul.bf16.gmra.mxu0 %v452
      %v595 = vpop.f32.mrf.mxu0
      %v596 = vadd.f32 0.0, %v595
      %v597 = vpop.f32.mrf.mxu0
      %v598 = vadd.f32 0.0, %v597
      %599 = vdwg.mxu0
      %600 = vmatpush.bf16.msra.mxu0 0
      %601 = vmatpush.bf16.msra.mxu0 0
      %602 = vmatpush.bf16.msra.mxu0 0
      %603 = vmatpush.bf16.msra.mxu0 0
      %604 = vmatpush.bf16.msra.mxu0 0
      %605 = vmatpush.bf16.msra.mxu0 0
      %606 = vmatpush.bf16.msra.mxu0 0
      %607 = vmatpush.bf16.msra.mxu0 %v552
      %608 = vmatmul.bf16.gmra.mxu0 %v584
      %v609 = vpop.f32.mrf.mxu0
      %v610 = vadd.f32 %v596, %v609
      %v611 = vpop.f32.mrf.mxu0
      %v612 = vadd.f32 %v598, %v611
      %613 = vdwg.mxu0
      %614 = vmatpush.bf16.msra.mxu0 %v550
      %615 = vmatpush.bf16.msra.mxu0 %v547
      %616 = vmatpush.bf16.msra.mxu0 %v544
      %617 = vmatpush.bf16.msra.mxu0 %v541
      %618 = vmatpush.bf16.msra.mxu0 %v538
      %619 = vmatpush.bf16.msra.mxu0 %v535
      %620 = vmatpush.bf16.msra.mxu0 %v532
      %621 = vmatpush.bf16.msra.mxu0 %v529
      %622 = vmatmul.bf16.gmra.mxu0 %v452
      %v623 = vpop.f32.mrf.mxu0
      %v624 = vadd.f32 0.0, %v623
      %v625 = vpop.f32.mrf.mxu0
      %v626 = vadd.f32 0.0, %v625
      %627 = vdwg.mxu0
      %628 = vmatpush.bf16.msra.mxu0 0
      %629 = vmatpush.bf16.msra.mxu0 0
      %630 = vmatpush.bf16.msra.mxu0 0
      %631 = vmatpush.bf16.msra.mxu0 0
      %632 = vmatpush.bf16.msra.mxu0 0
      %633 = vmatpush.bf16.msra.mxu0 0
      %634 = vmatpush.bf16.msra.mxu0 0
      %635 = vmatpush.bf16.msra.mxu0 %v553
      %636 = vmatmul.bf16.gmra.mxu0 %v584
      %v637 = vpop.f32.mrf.mxu0
      %v638 = vadd.f32 %v624, %v637
      %v639 = vpop.f32.mrf.mxu0
      %v640 = vadd.f32 %v626, %v639
      %641 = vdwg.mxu0
      %642 = vmatpush.bf16.msra.mxu0 %v551
      %643 = vmatpush.bf16.msra.mxu0 %v548
      %644 = vmatpush.bf16.msra.mxu0 %v545
      %645 = vmatpush.bf16.msra.mxu0 %v542
      %646 = vmatpush.bf16.msra.mxu0 %v539
      %647 = vmatpush.bf16.msra.mxu0 %v536
      %648 = vmatpush.bf16.msra.mxu0 %v533
      %649 = vmatpush.bf16.msra.mxu0 %v530
      %650 = vmatmul.bf16.gmra.mxu0 %v452
      %v651 = vpop.f32.mrf.mxu0
      %v652 = vadd.f32 0.0, %v651
      %v653 = vpop.f32.mrf.mxu0
      %v654 = vadd.f32 0.0, %v653
      %655 = vdwg.mxu0
      %656 = vmatpush.bf16.msra.mxu0 0
      %657 = vmatpush.bf16.msra.mxu0 0
      %658 = vmatpush.bf16.msra.mxu0 0
      %659 = vmatpush.bf16.msra.mxu0 0
      %660 = vmatpush.bf16.msra.mxu0 0
      %661 = vmatpush.bf16.msra.mxu0 0
      %662 = vmatpush.bf16.msra.mxu0 0
      %663 = vmatpush.bf16.msra.mxu0 %v554
      %664 = vmatmul.bf16.gmra.mxu0 %v584
      %v665 = vpop.f32.mrf.mxu0
      %v666 = vadd.f32 %v652, %v665
      %v667 = vpop.f32.mrf.mxu0
      %v668 = vadd.f32 %v654, %v667
      %669 = vdwg.mxu0
      %v670 = vpack.c.bf16 %v638, %v610
      %v671 = vpack.c.bf16 %v666, %v666
      %v672 = vpack.c.bf16 %v640, %v612
      %v673 = vpack.c.bf16 %v668, %v668
      %674 = vst [vmem:[%s259] sm:$0xff] %v670
      %675 = vst [vmem:[%s259 + $0x8] sm:$0xf] %v671
      %676 = vst [vmem:[%s259 + $0xc] sm:$0xff] %v672
      %677 = vst [vmem:[%s259 + $0x14] sm:$0xf] %v673
      %v678 = vunpack.c.l.bf16 %v670
      %v679 = vunpack.c.h.bf16 %v670
      %v680 = vunpack.c.l.bf16 %v671
      %v681 = vunpack.c.l.bf16 %v672
      %v682 = vunpack.c.h.bf16 %v672
      %v683 = vunpack.c.l.bf16 %v673
      %v684 = vsel %vm324, %v678, 0.0
      %v685 = vsel %vm325, %v679, 0.0
      %v686 = vsel %vm326, %v680, 0.0
      %v687 = vsel %vm324, %v681, 0.0
      %v688 = vsel %vm325, %v682, 0.0
      %v689 = vsel %vm326, %v683, 0.0
      %v690 = vadd.f32 %v684, %v685
      %v691 = vadd.f32 %v690, %v686
      %692 = vadd.xlane.f32.xlu0 %v691
      %v693 = vpop.xlane.xlu0 %692
      %v694 = vadd.f32 %v687, %v688
      %v695 = vadd.f32 %v694, %v689
      %696 = vadd.xlane.f32.xlu0 %v695
      %v697 = vpop.xlane.xlu0 %696
      %vm698 = vcmask 7168
      %699 = vst.msk [vmem:[%s264] sm:$0xff] %vm698, %v693
      %700 = vst.msk [vmem:[%s264 + $0x8] sm:$0xff] %vm698, %v697
      %v701 = vmul.f32 %v684, %v684
      %v702 = vmul.f32 %v685, %v685
      %v703 = vmul.f32 %v686, %v686
      %v704 = vmul.f32 %v687, %v687
      %v705 = vmul.f32 %v688, %v688
      %v706 = vmul.f32 %v689, %v689
      %v707 = vadd.f32 %v701, %v702
      %v708 = vadd.f32 %v707, %v703
      %709 = vadd.xlane.f32.xlu0 %v708
      %v710 = vpop.xlane.xlu0 %709
      %v711 = vadd.f32 %v704, %v705
      %v712 = vadd.f32 %v711, %v706
      %713 = vadd.xlane.f32.xlu0 %v712
      %v714 = vpop.xlane.xlu0 %713
      %vm715 = vcmask 15368
      %716 = vst.msk [vmem:[%s264] sm:$0xff] %vm715, %v710
      %717 = vst.msk [vmem:[%s264 + $0x8] sm:$0xff] %vm715, %v714
      %p718 = scmp.lt.s32.totalorder %s18, 1
      %s719 = scalar_select %p718, %s18, 1
      %s720 = smul.addr %s719, 6
      %s721 = smul.addr %s720, 4
      %s722 = scalar_lea.vmem %s5, %s721
      %p723 = scmp.lt.s32.totalorder %s18, 1
      %s724 = scalar_select %p723, %s18, 1
      %s725 = smul.addr %s724, 2
      %s726 = smul.addr %s725, 8
      %s727 = scalar_lea.vmem %s6, %s726
      // Predicated region
      $region41: #{residual_block_forward.4} parent=39 // pred_check
        %p728 = pneg %p146
      $region42: #{residual_block_forward.4} parent=39 // pred_check_branch
        %730 = sbr.rel (%p728) target = $region44
      $region43: #{residual_block_forward.4} parent=39 // pred_region
        _
      $region44: #{residual_block_forward.4} parent=39 // pred_fallthru
        _
      // Predicated region
      $region45: #{residual_block_forward.4} parent=39 // pred_check
        %p731 = pneg %p172
      $region46: #{residual_block_forward.4} parent=39 // pred_check_branch
        %733 = sbr.rel (%p731) target = $region48
      $region47: #{residual_block_forward.4} parent=39 // pred_region
        _
      $region48: #{residual_block_forward.4} parent=39 // pred_fallthru
        _
    $region40: #{residual_block_forward.4} parent=5 // pred_fallthru
      _
    %p734 = scmp.le.s32.totalorder 2, %s13
    // Predicated region
    $region49: #{residual_block_forward.4} parent=5 // pred_check
      %p735 = pneg %p734
    $region50: #{residual_block_forward.4} parent=5 // pred_check_branch
      %737 = sbr.rel (%p735) target = $region52
    $region51: #{residual_block_forward.4} parent=5 // pred_region
      %s738 = ssub.s32 %s13, 2
      // Predicated region
      $region53: #{residual_block_forward.4} parent=51 // pred_check
        %p739 = pneg %p152
      $region54: #{residual_block_forward.4} parent=51 // pred_check_branch
        %741 = sbr.rel (%p739) target = $region56
      $region55: #{residual_block_forward.4} parent=51 // pred_region
        %p742 = scmp.lt.s32.totalorder %s19, 1
        %s743 = scalar_select %p742, %s19, 1
        %s744 = smul.addr %s743, 6
        %s745 = smul.addr %s744, 4
        %s746 = scalar_lea.vmem %s5, %s745
      $region56: #{residual_block_forward.4} parent=51 // pred_fallthru
        _
      // Predicated region
      $region57: #{residual_block_forward.4} parent=51 // pred_check
        %p747 = pneg %p178
      $region58: #{residual_block_forward.4} parent=51 // pred_check_branch
        %749 = sbr.rel (%p747) target = $region60
      $region59: #{residual_block_forward.4} parent=51 // pred_region
        %p750 = scmp.lt.s32.totalorder %s19, 1
        %s751 = scalar_select %p750, %s19, 1
        %s752 = smul.addr %s751, 2
        %s753 = smul.addr %s752, 8
        %s754 = scalar_lea.vmem %s6, %s753
      $region60: #{residual_block_forward.4} parent=51 // pred_fallthru
        _
    $region52: #{residual_block_forward.4} parent=5 // pred_fallthru
      _
  $region6: #{residual_block_forward.4} parent=0 // loop_footer
    %s17 = sadd.s32 1, %s13
  $region7: #{residual_block_forward.4} parent=0 // loop_footer_branch
    %12 = sbr.rel target = $region3
  $region8: #{residual_block_forward.4} parent=0 // loop_exit
    _

</llo_original>
